<compile_context>
chip_gen: v7x
topology: tpu7x:2x2x1
jax: 0.10.0
libtpu: 0.0.40
codegen_flags: <defaults>
</compile_context>

<pallas_src>
import functools

import jax
import jax.numpy as jnp
import numpy as np
from jax.experimental import pallas as pl
from jax.experimental.pallas import tpu as pltpu

KSIZE = 7
PAD = KSIZE // 2
NTAPS = 2 * KSIZE      # 14 = (channel, kw) column taps
NTAPS_PAD = 16         # padded contraction dim for the MXU
KH_PAD = 8             # kh rows padded to a full sublane tile


def _fused_kernel(colmask_ref, rowmask_ref, pstats_ref, w2_ref,
                  curr_ref, prev_ref, out_ref, *, W):
    """Fused stats + 7x7 conv (MXU) + sigmoid gate + tanh blend for one batch block.

    colmask_ref: VMEM (7, HW) f32   1.0 where column x+kw-PAD is in range
    rowmask_ref: VMEM (7, HW) f32   1.0 where row    y+kh-PAD is in range
    pstats_ref:  VMEM (2, HW) f32   batch-global prev stats (avg, max)
    w2_ref:      VMEM (8, 16) f32   conv weight, [kh, c*7+kw], zero padded
    curr/prev/out: VMEM (bb, C, HW) lane-dense flattened spatial dims
    """
    f32 = jnp.float32
    curr = curr_ref[...]                                      # (bb, C, HW)
    prev = prev_ref[...]
    bb = curr.shape[0]
    HW = curr.shape[-1]

    # ---- per-batch channel stats of `curr` (fused: no extra HBM pass) ------
    curr_avg = jnp.mean(curr, axis=1, dtype=f32)              # (bb, HW)
    curr_max = jnp.max(curr, axis=1).astype(f32)              # (bb, HW)

    # merged 2-channel map; prev stats are batch-global -> broadcast over bb
    merged = (curr_avg + pstats_ref[0:1, :],                  # avg channel
              curr_max + pstats_ref[1:2, :])                  # max channel

    # ---- column taps: one XLU lane roll + border mask per (channel, kw) ----
    taps = []
    for c in range(2):
        for kw in range(KSIZE):
            d = kw - PAD                                      # horizontal offset
            sh = merged[c] if d == 0 else pltpu.roll(merged[c], (-d) % HW, 1)
            taps.append(sh * colmask_ref[kw:kw + 1, :])
    zero = jnp.zeros_like(merged[0])
    while len(taps) < NTAPS_PAD:
        taps.append(zero)
    taps = jnp.stack(taps, axis=1)                            # (bb, 16, HW)

    # ---- 98-tap contraction on the MXU --------------------------------------
    # rows[b, kh, p] = sum_t w2[kh, t] * taps[b, t, p]   (f32 accumulate)
    w2b = jnp.broadcast_to(w2_ref[...], (bb, KH_PAD, NTAPS_PAD))
    rows = jnp.einsum("bkt,btp->bkp", w2b, taps,
                      preferred_element_type=f32,
                      precision=jax.lax.Precision.HIGHEST)    # (bb, 8, HW)

    # ---- row rolls + border masks + sum (two independent add chains) -------
    acc0 = None
    acc1 = None
    for kh in range(KSIZE):
        r = rows[:, kh, :]                                    # (bb, HW)
        dv = (kh - PAD) * W                                   # vertical offset
        if dv != 0:
            r = pltpu.roll(r, (-dv) % HW, 1)
        r = r * rowmask_ref[kh:kh + 1, :]
        if kh % 2 == 0:
            acc0 = r if acc0 is None else acc0 + r
        else:
            acc1 = r if acc1 is None else acc1 + r
    conv = acc0 + acc1                                        # (bb, HW) f32

    # ---- gate + blend (lane-dense) ------------------------------------------
    gate = jax.nn.sigmoid(conv)[:, None, :]                   # (bb, 1, HW)
    out = (1.0 - gate) * jnp.tanh(curr) + gate * prev
    out_ref[...] = out.astype(out_ref.dtype)


def _vmem_capacity_bytes():
    try:
        return int(pltpu.get_tpu_info().vmem_capacity_bytes)
    except Exception:
        return 64 << 20      # conservative (v7x-sized) fallback


def _pick_batch_block(B, C, HW, itemsize, vmem_budget, target_step_bytes):
    """Batch-block size: big enough to amortize per-step overhead, small enough
    that double-buffered I/O + materialized conv/blend temps fit the budget,
    >=2 grid steps when B>=2 (dual TensorCore), prefer multiples of 8."""
    io_per_batch = 3 * C * HW * itemsize                 # curr + prev + out rows
    scratch_per_batch = (28 + 2 * C) * HW * 4            # taps/rows/merged + f32 blend temps
    const_bytes = 20 * HW * 4 + (1 << 20)                # masks, stats, weights, slack

    def need(bb):
        return 2 * bb * io_per_batch + bb * scratch_per_batch + const_bytes

    bb = 1
    for cand in range(1, B + 1):
        if need(cand) > vmem_budget:
            break
        bb = cand
        if cand * io_per_batch >= target_step_bytes:
            break
    if B >= 2:
        bb = min(bb, -(-B // 2))     # at least 2 grid steps for megacore sharding
    if bb >= 8:
        bb -= bb % 8                 # fill the 8-sublane axis of the conv temps
    bb = max(1, min(bb, B))
    return bb, need(bb)


@jax.jit
def spatial_attention_mtf(curr, prev, conv_w):
    """curr, prev: (B, C, H, W); conv_w: (1, 2, 7, 7) OIHW (no bias)."""
    B, C, H, W = curr.shape
    HW = H * W
    f32 = jnp.float32

    # Lane-dense views (trailing-dim collapse only) -- I/O stays in input dtype.
    curr_f = curr.reshape(B, C, HW)
    prev_f = prev.reshape(B, C, HW)

    # Batch-global prev stats: needs all of prev before any output exists, so it
    # is one tiny XLA reduction feeding the fused kernel.
    prev_sum = jnp.sum(prev_f, axis=0, dtype=f32)                          # (C, HW)
    prev_stats = jnp.stack(
        [jnp.mean(prev_sum, axis=0), jnp.max(prev_sum, axis=0)], axis=0)   # (2, HW)

    # Conv weight -> (kh, c*7+kw), zero padded to (8, 16) for the MXU path.
    w = conv_w.reshape(2, KSIZE, KSIZE).astype(f32)
    w2 = jnp.transpose(w, (1, 0, 2)).reshape(KSIZE, NTAPS)
    w2 = jnp.pad(w2, ((0, KH_PAD - KSIZE), (0, NTAPS_PAD - NTAPS)))        # (8, 16)

    # Static border masks for the implicit zero padding, in flat spatial layout.
    pos = np.arange(HW)
    ycoord, xcoord = pos // W, pos % W
    rowmask = jnp.asarray(np.stack(
        [((ycoord + kh - PAD >= 0) & (ycoord + kh - PAD < H))
         for kh in range(KSIZE)]).astype(np.float32))                      # (7, HW)
    colmask = jnp.asarray(np.stack(
        [((xcoord + kw - PAD >= 0) & (xcoord + kw - PAD < W))
         for kw in range(KSIZE)]).astype(np.float32))                      # (7, HW)

    # Generation-aware tiling / VMEM budgeting.
    itemsize = jnp.dtype(curr.dtype).itemsize
    vmem_cap = _vmem_capacity_bytes()
    vmem_budget = min(int(0.75 * vmem_cap), 96 << 20)      # <=48 MiB on 64-MiB chips
    target_step = (8 << 20) if vmem_cap <= (64 << 20) else (4 << 20)
    bb, vmem_need = _pick_batch_block(B, C, HW, itemsize, vmem_budget, target_step)

    cp_kwargs = dict(dimension_semantics=("parallel",))
    if vmem_need > (12 << 20):
        cp_kwargs["vmem_limit_bytes"] = int(min(vmem_need + (4 << 20), vmem_budget))

    grid = (pl.cdiv(B, bb),)

    out_flat = pl.pallas_call(
        functools.partial(_fused_kernel, W=W),
        out_shape=jax.ShapeDtypeStruct((B, C, HW), curr.dtype),
        grid=grid,
        in_specs=[
            pl.BlockSpec((KSIZE, HW), lambda b: (0, 0)),              # col masks
            pl.BlockSpec((KSIZE, HW), lambda b: (0, 0)),              # row masks
            pl.BlockSpec((2, HW), lambda b: (0, 0)),                  # prev stats
            pl.BlockSpec((KH_PAD, NTAPS_PAD), lambda b: (0, 0)),      # conv weights
            pl.BlockSpec((bb, C, HW), lambda b: (b, 0, 0)),           # curr
            pl.BlockSpec((bb, C, HW), lambda b: (b, 0, 0)),           # prev
        ],
        out_specs=pl.BlockSpec((bb, C, HW), lambda b: (b, 0, 0)),
        compiler_params=pltpu.CompilerParams(**cp_kwargs),
    )(colmask, rowmask, prev_stats, w2, curr_f, prev_f)

    return out_flat.reshape(B, C, H, W)


def _reference(curr, prev, conv_w):
    """Pure-JAX reference mirroring the PyTorch forward."""
    curr_avg = jnp.mean(curr, axis=1, keepdims=True)
    curr_max = jnp.max(curr, axis=1, keepdims=True)
    prev_sum = jnp.sum(prev, axis=0, keepdims=True)
    prev_avg = jnp.mean(prev_sum, axis=1, keepdims=True)
    prev_max = jnp.max(prev_sum, axis=1, keepdims=True)
    merged = jnp.concatenate([curr_avg + prev_avg, curr_max + prev_max], axis=1)
    conv = jax.lax.conv_general_dilated(
        merged, conv_w, window_strides=(1, 1),
        padding=((PAD, PAD), (PAD, PAD)),
        dimension_numbers=("NCHW", "OIHW", "NCHW"),
        precision=jax.lax.Precision.HIGHEST)
    gate = jax.nn.sigmoid(conv)
    return (1.0 - gate) * jnp.tanh(curr) + gate * prev


if __name__ == "__main__":
    key = jax.random.PRNGKey(0)
    k1, k2, k3 = jax.random.split(key, 3)

    B, C, H, W = 2, 4, 16, 16
    curr = jax.random.normal(k1, (B, C, H, W), dtype=jnp.float32)
    prev = jax.random.normal(k2, (B, C, H, W), dtype=jnp.float32)

    # Deterministic Conv2d(2, 1, 7, bias=False) weight (PyTorch-like uniform).
    fan_in = 2 * KSIZE * KSIZE
    bound = 1.0 / (fan_in ** 0.5)
    conv_w = jax.random.uniform(k3, (1, 2, KSIZE, KSIZE), jnp.float32,
                                minval=-bound, maxval=bound)

    out = spatial_attention_mtf(curr, prev, conv_w)
    out = jax.block_until_ready(out)

    ref = _reference(curr, prev, conv_w)
    max_err = float(jnp.max(jnp.abs(out - ref)))
    assert out.shape == (B, C, H, W)
    assert max_err < 1e-3, f"max_err={max_err}"

    print("KERNEL_OK")
</pallas_src>

<mosaic_0001>
module attributes {stable_mosaic.version = 11 : i64} {
  func.func @_fused_kernel(%arg0: i32, %arg1: memref<7x256xf32, #tpu.memory_space<vmem>>, %arg2: memref<7x256xf32, #tpu.memory_space<vmem>>, %arg3: memref<2x256xf32, #tpu.memory_space<vmem>>, %arg4: memref<8x16xf32, #tpu.memory_space<vmem>>, %arg5: memref<1x4x256xf32, #tpu.memory_space<vmem>>, %arg6: memref<1x4x256xf32, #tpu.memory_space<vmem>>, %arg7: memref<1x4x256xf32, #tpu.memory_space<vmem>>) attributes {dimension_semantics = [#tpu.dimension_semantics<parallel>], iteration_bounds = array<i64: 2>, scalar_prefetch = 0 : i64, scratch_operands = 0 : i64, tpu.core_type = #tpu.core_type<tc>, window_params = [{pipeline_mode = #tpu.pipeline_mode<synchronous>, transform_indices = @transform_0, window_bounds = array<i64: 7, 256>}, {pipeline_mode = #tpu.pipeline_mode<synchronous>, transform_indices = @transform_1, window_bounds = array<i64: 7, 256>}, {pipeline_mode = #tpu.pipeline_mode<synchronous>, transform_indices = @transform_2, window_bounds = array<i64: 2, 256>}, {pipeline_mode = #tpu.pipeline_mode<synchronous>, transform_indices = @transform_3, window_bounds = array<i64: 8, 16>}, {transform_indices = @transform_4, window_bounds = array<i64: 1, 4, 256>}, {transform_indices = @transform_5, window_bounds = array<i64: 1, 4, 256>}, {transform_indices = @transform_6, window_bounds = array<i64: 1, 4, 256>}]} {
    %c0 = arith.constant 0 : index
    %c0_0 = arith.constant 0 : index
    %c0_1 = arith.constant 0 : index
    %0 = vector.load %arg5[%c0, %c0_0, %c0_1] : memref<1x4x256xf32, #tpu.memory_space<vmem>>, vector<1x4x256xf32>
    %c0_2 = arith.constant 0 : index
    %c0_3 = arith.constant 0 : index
    %c0_4 = arith.constant 0 : index
    %1 = vector.load %arg6[%c0_2, %c0_3, %c0_4] : memref<1x4x256xf32, #tpu.memory_space<vmem>>, vector<1x4x256xf32>
    %cst = arith.constant dense<0.000000e+00> : vector<1x256xf32>
    %2 = vector.multi_reduction <add>, %0, %cst [1] : vector<1x4x256xf32> to vector<1x256xf32>
    %cst_5 = arith.constant 4.000000e+00 : f32
    %3 = vector.broadcast %cst_5 : f32 to vector<1x256xf32>
    %4 = arith.divf %2, %3 : vector<1x256xf32>
    %cst_6 = arith.constant dense<0xFF800000> : vector<1x256xf32>
    %5 = vector.multi_reduction <maximumf>, %0, %cst_6 [1] : vector<1x4x256xf32> to vector<1x256xf32>
    %c0_7 = arith.constant 0 : index
    %c0_8 = arith.constant 0 : index
    %6 = vector.load %arg3[%c0_7, %c0_8] : memref<2x256xf32, #tpu.memory_space<vmem>>, vector<1x256xf32>
    %7 = arith.addf %4, %6 : vector<1x256xf32>
    %c1 = arith.constant 1 : index
    %c0_9 = arith.constant 0 : index
    %8 = vector.load %arg3[%c1, %c0_9] : memref<2x256xf32, #tpu.memory_space<vmem>>, vector<1x256xf32>
    %9 = arith.addf %5, %8 : vector<1x256xf32>
    %c3_i32 = arith.constant 3 : i32
    %10 = tpu.dynamic_rotate %7 by %c3_i32 dim 1 : vector<1x256xf32>, i32 -> vector<1x256xf32>
    %c0_10 = arith.constant 0 : index
    %c0_11 = arith.constant 0 : index
    %11 = vector.load %arg1[%c0_10, %c0_11] : memref<7x256xf32, #tpu.memory_space<vmem>>, vector<1x256xf32>
    %12 = arith.mulf %10, %11 : vector<1x256xf32>
    %c2_i32 = arith.constant 2 : i32
    %13 = tpu.dynamic_rotate %7 by %c2_i32 dim 1 : vector<1x256xf32>, i32 -> vector<1x256xf32>
    %c1_12 = arith.constant 1 : index
    %c0_13 = arith.constant 0 : index
    %14 = vector.load %arg1[%c1_12, %c0_13] : memref<7x256xf32, #tpu.memory_space<vmem>>, vector<1x256xf32>
    %15 = arith.mulf %13, %14 : vector<1x256xf32>
    %c1_i32 = arith.constant 1 : i32
    %16 = tpu.dynamic_rotate %7 by %c1_i32 dim 1 : vector<1x256xf32>, i32 -> vector<1x256xf32>
    %c2 = arith.constant 2 : index
    %c0_14 = arith.constant 0 : index
    %17 = vector.load %arg1[%c2, %c0_14] : memref<7x256xf32, #tpu.memory_space<vmem>>, vector<1x256xf32>
    %18 = arith.mulf %16, %17 : vector<1x256xf32>
    %c3 = arith.constant 3 : index
    %c0_15 = arith.constant 0 : index
    %19 = vector.load %arg1[%c3, %c0_15] : memref<7x256xf32, #tpu.memory_space<vmem>>, vector<1x256xf32>
    %20 = arith.mulf %7, %19 : vector<1x256xf32>
    %c255_i32 = arith.constant 255 : i32
    %21 = tpu.dynamic_rotate %7 by %c255_i32 dim 1 : vector<1x256xf32>, i32 -> vector<1x256xf32>
    %c4 = arith.constant 4 : index
    %c0_16 = arith.constant 0 : index
    %22 = vector.load %arg1[%c4, %c0_16] : memref<7x256xf32, #tpu.memory_space<vmem>>, vector<1x256xf32>
    %23 = arith.mulf %21, %22 : vector<1x256xf32>
    %c254_i32 = arith.constant 254 : i32
    %24 = tpu.dynamic_rotate %7 by %c254_i32 dim 1 : vector<1x256xf32>, i32 -> vector<1x256xf32>
    %c5 = arith.constant 5 : index
    %c0_17 = arith.constant 0 : index
    %25 = vector.load %arg1[%c5, %c0_17] : memref<7x256xf32, #tpu.memory_space<vmem>>, vector<1x256xf32>
    %26 = arith.mulf %24, %25 : vector<1x256xf32>
    %c253_i32 = arith.constant 253 : i32
    %27 = tpu.dynamic_rotate %7 by %c253_i32 dim 1 : vector<1x256xf32>, i32 -> vector<1x256xf32>
    %c6 = arith.constant 6 : index
    %c0_18 = arith.constant 0 : index
    %28 = vector.load %arg1[%c6, %c0_18] : memref<7x256xf32, #tpu.memory_space<vmem>>, vector<1x256xf32>
    %29 = arith.mulf %27, %28 : vector<1x256xf32>
    %c3_i32_19 = arith.constant 3 : i32
    %30 = tpu.dynamic_rotate %9 by %c3_i32_19 dim 1 : vector<1x256xf32>, i32 -> vector<1x256xf32>
    %c0_20 = arith.constant 0 : index
    %c0_21 = arith.constant 0 : index
    %31 = vector.load %arg1[%c0_20, %c0_21] : memref<7x256xf32, #tpu.memory_space<vmem>>, vector<1x256xf32>
    %32 = arith.mulf %30, %31 : vector<1x256xf32>
    %c2_i32_22 = arith.constant 2 : i32
    %33 = tpu.dynamic_rotate %9 by %c2_i32_22 dim 1 : vector<1x256xf32>, i32 -> vector<1x256xf32>
    %c1_23 = arith.constant 1 : index
    %c0_24 = arith.constant 0 : index
    %34 = vector.load %arg1[%c1_23, %c0_24] : memref<7x256xf32, #tpu.memory_space<vmem>>, vector<1x256xf32>
    %35 = arith.mulf %33, %34 : vector<1x256xf32>
    %c1_i32_25 = arith.constant 1 : i32
    %36 = tpu.dynamic_rotate %9 by %c1_i32_25 dim 1 : vector<1x256xf32>, i32 -> vector<1x256xf32>
    %c2_26 = arith.constant 2 : index
    %c0_27 = arith.constant 0 : index
    %37 = vector.load %arg1[%c2_26, %c0_27] : memref<7x256xf32, #tpu.memory_space<vmem>>, vector<1x256xf32>
    %38 = arith.mulf %36, %37 : vector<1x256xf32>
    %c3_28 = arith.constant 3 : index
    %c0_29 = arith.constant 0 : index
    %39 = vector.load %arg1[%c3_28, %c0_29] : memref<7x256xf32, #tpu.memory_space<vmem>>, vector<1x256xf32>
    %40 = arith.mulf %9, %39 : vector<1x256xf32>
    %c255_i32_30 = arith.constant 255 : i32
    %41 = tpu.dynamic_rotate %9 by %c255_i32_30 dim 1 : vector<1x256xf32>, i32 -> vector<1x256xf32>
    %c4_31 = arith.constant 4 : index
    %c0_32 = arith.constant 0 : index
    %42 = vector.load %arg1[%c4_31, %c0_32] : memref<7x256xf32, #tpu.memory_space<vmem>>, vector<1x256xf32>
    %43 = arith.mulf %41, %42 : vector<1x256xf32>
    %c254_i32_33 = arith.constant 254 : i32
    %44 = tpu.dynamic_rotate %9 by %c254_i32_33 dim 1 : vector<1x256xf32>, i32 -> vector<1x256xf32>
    %c5_34 = arith.constant 5 : index
    %c0_35 = arith.constant 0 : index
    %45 = vector.load %arg1[%c5_34, %c0_35] : memref<7x256xf32, #tpu.memory_space<vmem>>, vector<1x256xf32>
    %46 = arith.mulf %44, %45 : vector<1x256xf32>
    %c253_i32_36 = arith.constant 253 : i32
    %47 = tpu.dynamic_rotate %9 by %c253_i32_36 dim 1 : vector<1x256xf32>, i32 -> vector<1x256xf32>
    %c6_37 = arith.constant 6 : index
    %c0_38 = arith.constant 0 : index
    %48 = vector.load %arg1[%c6_37, %c0_38] : memref<7x256xf32, #tpu.memory_space<vmem>>, vector<1x256xf32>
    %49 = arith.mulf %47, %48 : vector<1x256xf32>
    %cst_39 = arith.constant 0.000000e+00 : f32
    %50 = vector.broadcast %cst_39 : f32 to vector<1x256xf32>
    %51 = vector.shape_cast %12 : vector<1x256xf32> to vector<1x1x256xf32>
    %52 = vector.shape_cast %15 : vector<1x256xf32> to vector<1x1x256xf32>
    %53 = vector.shape_cast %18 : vector<1x256xf32> to vector<1x1x256xf32>
    %54 = vector.shape_cast %20 : vector<1x256xf32> to vector<1x1x256xf32>
    %55 = vector.shape_cast %23 : vector<1x256xf32> to vector<1x1x256xf32>
    %56 = vector.shape_cast %26 : vector<1x256xf32> to vector<1x1x256xf32>
    %57 = vector.shape_cast %29 : vector<1x256xf32> to vector<1x1x256xf32>
    %58 = vector.shape_cast %32 : vector<1x256xf32> to vector<1x1x256xf32>
    %59 = vector.shape_cast %35 : vector<1x256xf32> to vector<1x1x256xf32>
    %60 = vector.shape_cast %38 : vector<1x256xf32> to vector<1x1x256xf32>
    %61 = vector.shape_cast %40 : vector<1x256xf32> to vector<1x1x256xf32>
    %62 = vector.shape_cast %43 : vector<1x256xf32> to vector<1x1x256xf32>
    %63 = vector.shape_cast %46 : vector<1x256xf32> to vector<1x1x256xf32>
    %64 = vector.shape_cast %49 : vector<1x256xf32> to vector<1x1x256xf32>
    %65 = vector.shape_cast %50 : vector<1x256xf32> to vector<1x1x256xf32>
    %66 = vector.shape_cast %50 : vector<1x256xf32> to vector<1x1x256xf32>
    %67 = tpu.concatenate %51, %52, %53, %54, %55, %56, %57, %58, %59, %60, %61, %62, %63, %64, %65, %66 in 1 : vector<1x1x256xf32>, vector<1x1x256xf32>, vector<1x1x256xf32>, vector<1x1x256xf32>, vector<1x1x256xf32>, vector<1x1x256xf32>, vector<1x1x256xf32>, vector<1x1x256xf32>, vector<1x1x256xf32>, vector<1x1x256xf32>, vector<1x1x256xf32>, vector<1x1x256xf32>, vector<1x1x256xf32>, vector<1x1x256xf32>, vector<1x1x256xf32>, vector<1x1x256xf32> -> vector<1x16x256xf32>
    %c0_40 = arith.constant 0 : index
    %c0_41 = arith.constant 0 : index
    %68 = vector.load %arg4[%c0_40, %c0_41] : memref<8x16xf32, #tpu.memory_space<vmem>>, vector<8x16xf32>
    %69 = vector.shape_cast %68 : vector<8x16xf32> to vector<1x8x16xf32>
    "tpu.trace_start"() <{level = 10 : i32, message = "bkt,btp->bkp"}> : () -> ()
    %cst_42 = arith.constant dense<0.000000e+00> : vector<1x8x256xf32>
    %70 = tpu.matmul %69, %67, %cst_42 {dimension_numbers = #tpu.dot_dimension_numbers<[2], [1], [1], [2], [0, 0, 0, 1, 1, 2], [0], [0]>, precision = #tpu.contract_precision<fp32>} : vector<1x8x16xf32>, vector<1x16x256xf32>, vector<1x8x256xf32> -> vector<1x8x256xf32>
    "tpu.trace_stop"() : () -> ()
    %71 = vector.extract_strided_slice %70 {offsets = [0, 0, 0], sizes = [1, 1, 256], strides = [1, 1, 1]} : vector<1x8x256xf32> to vector<1x1x256xf32>
    %72 = vector.shape_cast %71 : vector<1x1x256xf32> to vector<1x256xf32>
    %c48_i32 = arith.constant 48 : i32
    %73 = tpu.dynamic_rotate %72 by %c48_i32 dim 1 : vector<1x256xf32>, i32 -> vector<1x256xf32>
    %c0_43 = arith.constant 0 : index
    %c0_44 = arith.constant 0 : index
    %74 = vector.load %arg2[%c0_43, %c0_44] : memref<7x256xf32, #tpu.memory_space<vmem>>, vector<1x256xf32>
    %75 = arith.mulf %73, %74 : vector<1x256xf32>
    %76 = vector.extract_strided_slice %70 {offsets = [0, 1, 0], sizes = [1, 1, 256], strides = [1, 1, 1]} : vector<1x8x256xf32> to vector<1x1x256xf32>
    %77 = vector.shape_cast %76 : vector<1x1x256xf32> to vector<1x256xf32>
    %c32_i32 = arith.constant 32 : i32
    %78 = tpu.dynamic_rotate %77 by %c32_i32 dim 1 : vector<1x256xf32>, i32 -> vector<1x256xf32>
    %c1_45 = arith.constant 1 : index
    %c0_46 = arith.constant 0 : index
    %79 = vector.load %arg2[%c1_45, %c0_46] : memref<7x256xf32, #tpu.memory_space<vmem>>, vector<1x256xf32>
    %80 = arith.mulf %78, %79 : vector<1x256xf32>
    %81 = vector.extract_strided_slice %70 {offsets = [0, 2, 0], sizes = [1, 1, 256], strides = [1, 1, 1]} : vector<1x8x256xf32> to vector<1x1x256xf32>
    %82 = vector.shape_cast %81 : vector<1x1x256xf32> to vector<1x256xf32>
    %c16_i32 = arith.constant 16 : i32
    %83 = tpu.dynamic_rotate %82 by %c16_i32 dim 1 : vector<1x256xf32>, i32 -> vector<1x256xf32>
    %c2_47 = arith.constant 2 : index
    %c0_48 = arith.constant 0 : index
    %84 = vector.load %arg2[%c2_47, %c0_48] : memref<7x256xf32, #tpu.memory_space<vmem>>, vector<1x256xf32>
    %85 = arith.mulf %83, %84 : vector<1x256xf32>
    %86 = arith.addf %75, %85 : vector<1x256xf32>
    %87 = vector.extract_strided_slice %70 {offsets = [0, 3, 0], sizes = [1, 1, 256], strides = [1, 1, 1]} : vector<1x8x256xf32> to vector<1x1x256xf32>
    %88 = vector.shape_cast %87 : vector<1x1x256xf32> to vector<1x256xf32>
    %c3_49 = arith.constant 3 : index
    %c0_50 = arith.constant 0 : index
    %89 = vector.load %arg2[%c3_49, %c0_50] : memref<7x256xf32, #tpu.memory_space<vmem>>, vector<1x256xf32>
    %90 = arith.mulf %88, %89 : vector<1x256xf32>
    %91 = arith.addf %80, %90 : vector<1x256xf32>
    %92 = vector.extract_strided_slice %70 {offsets = [0, 4, 0], sizes = [1, 1, 256], strides = [1, 1, 1]} : vector<1x8x256xf32> to vector<1x1x256xf32>
    %93 = vector.shape_cast %92 : vector<1x1x256xf32> to vector<1x256xf32>
    %c240_i32 = arith.constant 240 : i32
    %94 = tpu.dynamic_rotate %93 by %c240_i32 dim 1 : vector<1x256xf32>, i32 -> vector<1x256xf32>
    %c4_51 = arith.constant 4 : index
    %c0_52 = arith.constant 0 : index
    %95 = vector.load %arg2[%c4_51, %c0_52] : memref<7x256xf32, #tpu.memory_space<vmem>>, vector<1x256xf32>
    %96 = arith.mulf %94, %95 : vector<1x256xf32>
    %97 = arith.addf %86, %96 : vector<1x256xf32>
    %98 = vector.extract_strided_slice %70 {offsets = [0, 5, 0], sizes = [1, 1, 256], strides = [1, 1, 1]} : vector<1x8x256xf32> to vector<1x1x256xf32>
    %99 = vector.shape_cast %98 : vector<1x1x256xf32> to vector<1x256xf32>
    %c224_i32 = arith.constant 224 : i32
    %100 = tpu.dynamic_rotate %99 by %c224_i32 dim 1 : vector<1x256xf32>, i32 -> vector<1x256xf32>
    %c5_53 = arith.constant 5 : index
    %c0_54 = arith.constant 0 : index
    %101 = vector.load %arg2[%c5_53, %c0_54] : memref<7x256xf32, #tpu.memory_space<vmem>>, vector<1x256xf32>
    %102 = arith.mulf %100, %101 : vector<1x256xf32>
    %103 = arith.addf %91, %102 : vector<1x256xf32>
    %104 = vector.extract_strided_slice %70 {offsets = [0, 6, 0], sizes = [1, 1, 256], strides = [1, 1, 1]} : vector<1x8x256xf32> to vector<1x1x256xf32>
    %105 = vector.shape_cast %104 : vector<1x1x256xf32> to vector<1x256xf32>
    %c208_i32 = arith.constant 208 : i32
    %106 = tpu.dynamic_rotate %105 by %c208_i32 dim 1 : vector<1x256xf32>, i32 -> vector<1x256xf32>
    %c6_55 = arith.constant 6 : index
    %c0_56 = arith.constant 0 : index
    %107 = vector.load %arg2[%c6_55, %c0_56] : memref<7x256xf32, #tpu.memory_space<vmem>>, vector<1x256xf32>
    %108 = arith.mulf %106, %107 : vector<1x256xf32>
    %109 = arith.addf %97, %108 : vector<1x256xf32>
    %110 = arith.addf %109, %103 : vector<1x256xf32>
    %111 = arith.negf %110 : vector<1x256xf32>
    %112 = math.exp %111 : vector<1x256xf32>
    %cst_57 = arith.constant 1.000000e+00 : f32
    %113 = vector.broadcast %cst_57 : f32 to vector<1x256xf32>
    %114 = arith.addf %113, %112 : vector<1x256xf32>
    %115 = arith.divf %113, %114 : vector<1x256xf32>
    %116 = vector.shape_cast %115 : vector<1x256xf32> to vector<1x1x256xf32>
    %cst_58 = arith.constant 1.000000e+00 : f32
    %117 = vector.broadcast %cst_58 : f32 to vector<1x1x256xf32>
    %118 = arith.subf %117, %116 : vector<1x1x256xf32>
    %119 = math.tanh %0 : vector<1x4x256xf32>
    %120 = vector.broadcast %118 : vector<1x1x256xf32> to vector<1x4x256xf32>
    %121 = arith.mulf %120, %119 : vector<1x4x256xf32>
    %122 = vector.broadcast %116 : vector<1x1x256xf32> to vector<1x4x256xf32>
    %123 = arith.mulf %122, %1 : vector<1x4x256xf32>
    %124 = arith.addf %121, %123 : vector<1x4x256xf32>
    %c0_59 = arith.constant 0 : index
    %c0_60 = arith.constant 0 : index
    %c0_61 = arith.constant 0 : index
    %125 = vector.load %arg7[%c0_59, %c0_60, %c0_61] : memref<1x4x256xf32, #tpu.memory_space<vmem>>, vector<1x4x256xf32>
    tpu.vector_store %arg7[%c0_59, %c0_60, %c0_61], %124 {strides = array<i32>} : memref<1x4x256xf32, #tpu.memory_space<vmem>>, vector<1x4x256xf32>,
    return
  }
  func.func @transform_0(%arg0: i32) -> (i32, i32) {
    %c0_i32 = arith.constant 0 : i32
    %c0_i32_0 = arith.constant 0 : i32
    %c0_i32_1 = arith.constant 0 : i32
    return %c0_i32, %c0_i32_0 : i32, i32
  }
  func.func @transform_1(%arg0: i32) -> (i32, i32) {
    %c0_i32 = arith.constant 0 : i32
    %c0_i32_0 = arith.constant 0 : i32
    %c0_i32_1 = arith.constant 0 : i32
    return %c0_i32, %c0_i32_0 : i32, i32
  }
  func.func @transform_2(%arg0: i32) -> (i32, i32) {
    %c0_i32 = arith.constant 0 : i32
    %c0_i32_0 = arith.constant 0 : i32
    %c0_i32_1 = arith.constant 0 : i32
    return %c0_i32, %c0_i32_0 : i32, i32
  }
  func.func @transform_3(%arg0: i32) -> (i32, i32) {
    %c0_i32 = arith.constant 0 : i32
    %c0_i32_0 = arith.constant 0 : i32
    %c0_i32_1 = arith.constant 0 : i32
    return %c0_i32, %c0_i32_0 : i32, i32
  }
  func.func @transform_4(%arg0: i32) -> (i32, i32, i32) {
    %c0_i32 = arith.constant 0 : i32
    %c0_i32_0 = arith.constant 0 : i32
    %c0_i32_1 = arith.constant 0 : i32
    return %arg0, %c0_i32, %c0_i32_0 : i32, i32, i32
  }
  func.func @transform_5(%arg0: i32) -> (i32, i32, i32) {
    %c0_i32 = arith.constant 0 : i32
    %c0_i32_0 = arith.constant 0 : i32
    %c0_i32_1 = arith.constant 0 : i32
    return %arg0, %c0_i32, %c0_i32_0 : i32, i32, i32
  }
  func.func @transform_6(%arg0: i32) -> (i32, i32, i32) {
    %c0_i32 = arith.constant 0 : i32
    %c0_i32_0 = arith.constant 0 : i32
    %c0_i32_1 = arith.constant 0 : i32
    return %arg0, %c0_i32, %c0_i32_0 : i32, i32, i32
  }
}

</mosaic_0001>

<llo_original>
// kernel: spatial_attention_mtf.1
$region0: #{spatial_attention_mtf.1}
  #allocation0 [shape = 'u32[]', space=smem, size = 0x4, offset = 0x4, fixed_abs, tag = 'smem constant byte address 0x4 - core index']
  #allocation1 [shape = 'u32[144,128]{1,0:T(1,128)}', space=vmem, size = 0x12000, scoped, tag = 'internal scratch']
  %s0 = inlined_call_operand.vmem [shape: f32[7,256], index: 0, kind: input, shape index: {}]
  %s1 = inlined_call_operand.vmem [shape: f32[7,256], index: 1, kind: input, shape index: {}]
  %s2 = inlined_call_operand.vmem [shape: f32[2,256], index: 2, kind: input, shape index: {}]
  %s3 = inlined_call_operand.vmem [shape: f32[8,16], index: 3, kind: input, shape index: {}]
  %s4 = inlined_call_operand.vmem [shape: f32[2,4,256], index: 4, kind: input, shape index: {}]
  %s5 = inlined_call_operand.vmem [shape: f32[2,4,256], index: 5, kind: input, shape index: {}]
  %s6 = inlined_call_operand.vmem [shape: f32[2,4,256], index: 6, kind: output, shape index: {}]
  %s7 = sld [smem:[#allocation0]]
  $region57: #{spatial_attention_mtf.1} parent=0
    _
  %s9 = ssub.s32 1, %s7
  %s10 = scalar_select 0, %s9, %s7
  loop: start=0, step=1, limit=4
  $region2: #{spatial_attention_mtf.1} parent=0 // loop_pre_header
    _
  $region3: #{spatial_attention_mtf.1} parent=0 // loop_header
    %s12 = sphi 0, %s16
    %p13 = scmp.ge.s32.totalorder %s12, 4
    %s20 = sphi 0, %s20
    %s22 = sphi 0, %s20
    %s23 = sphi 0, %s22
    %s37 = sphi 0, %s23
    %s41 = sphi 0, %s41
    %s43 = sphi 0, %s41
    %s44 = sphi 0, %s43
    %s58 = sphi 0, %s44
    %s62 = sphi 0, %s62
    %s64 = sphi 0, %s62
    %s65 = sphi 0, %s64
    %s79 = sphi 0, %s65
    %s83 = sphi 0, %s83
    %s85 = sphi 0, %s83
    %s86 = sphi 0, %s85
    %s100 = sphi 0, %s86
    %s106 = sphi 0, %s108
    %s109 = sphi 0, %s106
    %s110 = sphi 0, %s109
    %s126 = sphi 0, %s110
    %s132 = sphi 0, %s134
    %s135 = sphi 0, %s132
    %s136 = sphi 0, %s135
    %s152 = sphi 0, %s136
    %s158 = sphi 0, %s160
    %s161 = sphi 0, %s158
    %s162 = sphi 0, %s161
    %s178 = sphi 0, %s162
  $region4: #{spatial_attention_mtf.1} parent=0 // loop_header_branch
    %15 = sbr.rel (%p13) target = $region8
  $region5: #{spatial_attention_mtf.1} parent=0 // loop_body
    %s17 = ssub.s32 %s12, 1
    %s18 = ssub.s32 %s12, 2
    %s19 = sadd.s32 %s12, 1
    %s21 = sadd.s32 %s20, 1
    %p24 = scmp.eq.s32.totalorder %s12, 1
    %p25 = scmp.ne.s32.totalorder %s20, %s22
    %p26 = scmp.eq.s32.totalorder %s12, 0
    %p27 = por %p25, %p26
    %p28 = scmp.ne.s32.totalorder %s20, %s22
    %p29 = scmp.eq.s32.totalorder %s17, 1
    %p30 = por %p28, %p29
    %p31 = scmp.ne.s32.totalorder %s22, %s23
    %p32 = scmp.eq.s32.totalorder %s17, 0
    %p33 = por %p31, %p32
    %p34 = scmp.ne.s32.totalorder %s22, %s23
    %p35 = scmp.eq.s32.totalorder %s18, 1
    %p36 = por %p34, %p35
    %p38 = scmp.ne.s32.totalorder %s23, %s37
    %p39 = scmp.eq.s32.totalorder %s18, 0
    %p40 = por %p38, %p39
    %s42 = sadd.s32 %s41, 1
    %p45 = scmp.eq.s32.totalorder %s12, 1
    %p46 = scmp.ne.s32.totalorder %s41, %s43
    %p47 = scmp.eq.s32.totalorder %s12, 0
    %p48 = por %p46, %p47
    %p49 = scmp.ne.s32.totalorder %s41, %s43
    %p50 = scmp.eq.s32.totalorder %s17, 1
    %p51 = por %p49, %p50
    %p52 = scmp.ne.s32.totalorder %s43, %s44
    %p53 = scmp.eq.s32.totalorder %s17, 0
    %p54 = por %p52, %p53
    %p55 = scmp.ne.s32.totalorder %s43, %s44
    %p56 = scmp.eq.s32.totalorder %s18, 1
    %p57 = por %p55, %p56
    %p59 = scmp.ne.s32.totalorder %s44, %s58
    %p60 = scmp.eq.s32.totalorder %s18, 0
    %p61 = por %p59, %p60
    %s63 = sadd.s32 %s62, 1
    %p66 = scmp.eq.s32.totalorder %s12, 1
    %p67 = scmp.ne.s32.totalorder %s62, %s64
    %p68 = scmp.eq.s32.totalorder %s12, 0
    %p69 = por %p67, %p68
    %p70 = scmp.ne.s32.totalorder %s62, %s64
    %p71 = scmp.eq.s32.totalorder %s17, 1
    %p72 = por %p70, %p71
    %p73 = scmp.ne.s32.totalorder %s64, %s65
    %p74 = scmp.eq.s32.totalorder %s17, 0
    %p75 = por %p73, %p74
    %p76 = scmp.ne.s32.totalorder %s64, %s65
    %p77 = scmp.eq.s32.totalorder %s18, 1
    %p78 = por %p76, %p77
    %p80 = scmp.ne.s32.totalorder %s65, %s79
    %p81 = scmp.eq.s32.totalorder %s18, 0
    %p82 = por %p80, %p81
    %s84 = sadd.s32 %s83, 1
    %p87 = scmp.eq.s32.totalorder %s12, 1
    %p88 = scmp.ne.s32.totalorder %s83, %s85
    %p89 = scmp.eq.s32.totalorder %s12, 0
    %p90 = por %p88, %p89
    %p91 = scmp.ne.s32.totalorder %s83, %s85
    %p92 = scmp.eq.s32.totalorder %s17, 1
    %p93 = por %p91, %p92
    %p94 = scmp.ne.s32.totalorder %s85, %s86
    %p95 = scmp.eq.s32.totalorder %s17, 0
    %p96 = por %p94, %p95
    %p97 = scmp.ne.s32.totalorder %s85, %s86
    %p98 = scmp.eq.s32.totalorder %s18, 1
    %p99 = por %p97, %p98
    %p101 = scmp.ne.s32.totalorder %s86, %s100
    %p102 = scmp.eq.s32.totalorder %s18, 0
    %p103 = por %p101, %p102
    %s104 = ssub.s32 %s12, %s19
    %p105 = scmp.eq.s32.totalorder %s104, 0
    %s107 = sadd.s32 %s106, 1
    %s108 = scalar_select %p105, %s106, %s107
    %p111 = pneg %p105
    %p112 = scmp.eq.s32.totalorder %s12, 1
    %p113 = por %p111, %p112
    %p114 = scmp.ne.s32.totalorder %s106, %s109
    %p115 = scmp.eq.s32.totalorder %s12, 0
    %p116 = por %p114, %p115
    %p117 = scmp.ne.s32.totalorder %s106, %s109
    %p118 = scmp.eq.s32.totalorder %s17, 1
    %p119 = por %p117, %p118
    %p120 = scmp.ne.s32.totalorder %s109, %s110
    %p121 = scmp.eq.s32.totalorder %s17, 0
    %p122 = por %p120, %p121
    %p123 = scmp.ne.s32.totalorder %s109, %s110
    %p124 = scmp.eq.s32.totalorder %s18, 1
    %p125 = por %p123, %p124
    %p127 = scmp.ne.s32.totalorder %s110, %s126
    %p128 = scmp.eq.s32.totalorder %s18, 0
    %p129 = por %p127, %p128
    %s130 = ssub.s32 %s12, %s19
    %p131 = scmp.eq.s32.totalorder %s130, 0
    %s133 = sadd.s32 %s132, 1
    %s134 = scalar_select %p131, %s132, %s133
    %p137 = pneg %p131
    %p138 = scmp.eq.s32.totalorder %s12, 1
    %p139 = por %p137, %p138
    %p140 = scmp.ne.s32.totalorder %s132, %s135
    %p141 = scmp.eq.s32.totalorder %s12, 0
    %p142 = por %p140, %p141
    %p143 = scmp.ne.s32.totalorder %s132, %s135
    %p144 = scmp.eq.s32.totalorder %s17, 1
    %p145 = por %p143, %p144
    %p146 = scmp.ne.s32.totalorder %s135, %s136
    %p147 = scmp.eq.s32.totalorder %s17, 0
    %p148 = por %p146, %p147
    %p149 = scmp.ne.s32.totalorder %s135, %s136
    %p150 = scmp.eq.s32.totalorder %s18, 1
    %p151 = por %p149, %p150
    %p153 = scmp.ne.s32.totalorder %s136, %s152
    %p154 = scmp.eq.s32.totalorder %s18, 0
    %p155 = por %p153, %p154
    %s156 = ssub.s32 %s12, %s19
    %p157 = scmp.eq.s32.totalorder %s156, 0
    %s159 = sadd.s32 %s158, 1
    %s160 = scalar_select %p157, %s158, %s159
    %p163 = pneg %p157
    %p164 = scmp.eq.s32.totalorder %s12, 1
    %p165 = por %p163, %p164
    %p166 = scmp.ne.s32.totalorder %s158, %s161
    %p167 = scmp.eq.s32.totalorder %s12, 0
    %p168 = por %p166, %p167
    %p169 = scmp.ne.s32.totalorder %s158, %s161
    %p170 = scmp.eq.s32.totalorder %s17, 1
    %p171 = por %p169, %p170
    %p172 = scmp.ne.s32.totalorder %s161, %s162
    %p173 = scmp.eq.s32.totalorder %s17, 0
    %p174 = por %p172, %p173
    %p175 = scmp.ne.s32.totalorder %s161, %s162
    %p176 = scmp.eq.s32.totalorder %s18, 1
    %p177 = por %p175, %p176
    %p179 = scmp.ne.s32.totalorder %s162, %s178
    %p180 = scmp.eq.s32.totalorder %s18, 0
    %p181 = por %p179, %p180
    %p182 = scmp.le.s32.totalorder 1, %s12
    %p183 = scmp.lt.s32.totalorder %s12, 3
    %p184 = pnand %p182, %p183
    %p185 = pneg %p184
    // Predicated region
    $region9: #{spatial_attention_mtf.1} parent=5 // pred_check
      _
    $region10: #{spatial_attention_mtf.1} parent=5 // pred_check_branch
      %187 = sbr.rel (%p184) target = $region12
    $region11: #{spatial_attention_mtf.1} parent=5 // pred_region
      %s188 = ssub.s32 %s12, 1
      // Predicated region
      $region13: #{spatial_attention_mtf.1} parent=11 // pred_check
        %p189 = pneg %p33
      $region14: #{spatial_attention_mtf.1} parent=11 // pred_check_branch
        %191 = sbr.rel (%p189) target = $region16
      $region15: #{spatial_attention_mtf.1} parent=11 // pred_region
        _
      $region16: #{spatial_attention_mtf.1} parent=11 // pred_fallthru
        _
      // Predicated region
      $region17: #{spatial_attention_mtf.1} parent=11 // pred_check
        %p192 = pneg %p54
      $region18: #{spatial_attention_mtf.1} parent=11 // pred_check_branch
        %194 = sbr.rel (%p192) target = $region20
      $region19: #{spatial_attention_mtf.1} parent=11 // pred_region
        _
      $region20: #{spatial_attention_mtf.1} parent=11 // pred_fallthru
        _
      // Predicated region
      $region21: #{spatial_attention_mtf.1} parent=11 // pred_check
        %p195 = pneg %p75
      $region22: #{spatial_attention_mtf.1} parent=11 // pred_check_branch
        %197 = sbr.rel (%p195) target = $region24
      $region23: #{spatial_attention_mtf.1} parent=11 // pred_region
        _
      $region24: #{spatial_attention_mtf.1} parent=11 // pred_fallthru
        _
      // Predicated region
      $region25: #{spatial_attention_mtf.1} parent=11 // pred_check
        %p198 = pneg %p96
      $region26: #{spatial_attention_mtf.1} parent=11 // pred_check_branch
        %200 = sbr.rel (%p198) target = $region28
      $region27: #{spatial_attention_mtf.1} parent=11 // pred_region
        _
      $region28: #{spatial_attention_mtf.1} parent=11 // pred_fallthru
        _
    $region12: #{spatial_attention_mtf.1} parent=5 // pred_fallthru
      _
    %p201 = scmp.lt.s32.totalorder %s12, 2
    // Predicated region
    $region29: #{spatial_attention_mtf.1} parent=5 // pred_check
      %p202 = pneg %p201
    $region30: #{spatial_attention_mtf.1} parent=5 // pred_check_branch
      %204 = sbr.rel (%p202) target = $region32
    $region31: #{spatial_attention_mtf.1} parent=5 // pred_region
      // Predicated region
      $region33: #{spatial_attention_mtf.1} parent=31 // pred_check
        %p205 = pneg %p116
      $region34: #{spatial_attention_mtf.1} parent=31 // pred_check_branch
        %207 = sbr.rel (%p205) target = $region36
      $region35: #{spatial_attention_mtf.1} parent=31 // pred_region
        %p208 = scmp.lt.s32.totalorder %s12, 1
        %s209 = scalar_select %p208, %s12, 1
        %s210 = smul.addr %s209, 2
        %s211 = smul.addr %s210, 4
        %s212 = scalar_lea.vmem %s4, %s211
      $region36: #{spatial_attention_mtf.1} parent=31 // pred_fallthru
        _
      // Predicated region
      $region37: #{spatial_attention_mtf.1} parent=31 // pred_check
        %p213 = pneg %p142
      $region38: #{spatial_attention_mtf.1} parent=31 // pred_check_branch
        %215 = sbr.rel (%p213) target = $region40
      $region39: #{spatial_attention_mtf.1} parent=31 // pred_region
        %p216 = scmp.lt.s32.totalorder %s12, 1
        %s217 = scalar_select %p216, %s12, 1
        %s218 = smul.addr %s217, 2
        %s219 = smul.addr %s218, 4
        %s220 = scalar_lea.vmem %s5, %s219
      $region40: #{spatial_attention_mtf.1} parent=31 // pred_fallthru
        _
    $region32: #{spatial_attention_mtf.1} parent=5 // pred_fallthru
      _
    %p221 = scmp.le.s32.totalorder 1, %s12
    %p222 = scmp.lt.s32.totalorder %s12, 3
    %p223 = pnand %p221, %p222
    %p224 = pneg %p223
    // Predicated region
    $region41: #{spatial_attention_mtf.1} parent=5 // pred_check
      _
    $region42: #{spatial_attention_mtf.1} parent=5 // pred_check_branch
      %226 = sbr.rel (%p223) target = $region44
    $region43: #{spatial_attention_mtf.1} parent=5 // pred_region
      %s227 = ssub.s32 %s12, 1
      %p228 = pneg %p33
      %p229 = pneg %p30
      %p230 = pneg %p54
      %p231 = pneg %p51
      %p232 = pneg %p75
      %p233 = pneg %p72
      %p234 = pneg %p96
      %p235 = pneg %p93
      %p236 = scmp.lt.s32.totalorder %s17, 1
      %s237 = scalar_select %p236, %s17, 1
      %s238 = smul.addr %s237, 2
      %s239 = smul.addr %s238, 4
      %s240 = scalar_lea.vmem %s4, %s239
      %p241 = pneg %p122
      %p242 = pneg %p119
      %p243 = scmp.lt.s32.totalorder %s17, 1
      %s244 = scalar_select %p243, %s17, 1
      %s245 = smul.addr %s244, 2
      %s246 = smul.addr %s245, 4
      %s247 = scalar_lea.vmem %s5, %s246
      %p248 = pneg %p148
      %p249 = pneg %p145
      %p250 = pneg %p174
      %p251 = pneg %p171
      %p252 = scmp.lt.s32.totalorder %s17, 1
      %s253 = scalar_select %p252, %s17, 1
      %s254 = smul.addr %s253, 2
      %s255 = smul.addr %s254, 4
      %s256 = scalar_lea.vmem %s6, %s255
      %p257 = scmp.lt.s32.totalorder %s17, 1
      %s258 = scalar_select %p257, %s17, 1
      %s259 = smul.addr %s258, 2
      %s260 = smul.addr %s259, 4
      %s261 = scalar_lea.vmem %s4, %s260
      %p262 = scmp.lt.s32.totalorder %s17, 1
      %s263 = scalar_select %p262, %s17, 1
      %s264 = smul.addr %s263, 2
      %s265 = smul.addr %s264, 4
      %s266 = scalar_lea.vmem %s5, %s265
      %p267 = scmp.lt.s32.totalorder %s17, 1
      %s268 = scalar_select %p267, %s17, 1
      %s269 = smul.addr %s268, 2
      %s270 = smul.addr %s269, 4
      %s271 = scalar_lea.vmem %s6, %s270
      %v272 = vld [vmem:[%s261] sm:$0xff]
      %v273 = vld [vmem:[%s266] sm:$0xff]
      %v275 = vcombine.high %v272, %v272
      %vm277 = vcmask 1043456
      %v278 = vsel %vm277, %v272, 0.0
      %v279 = vrot.slane %v278, 4
      %v280 = vadd.f32 %v278, %v279
      %v281 = vrot.slane %v280, 2
      %v282 = vadd.f32 %v280, %v281
      %v283 = vrot.slane %v282, 1
      %v284 = vadd.f32 %v282, %v283
      %v285 = vsel %vm277, %v275, 0.0
      %v286 = vrot.slane %v285, 4
      %v287 = vadd.f32 %v285, %v286
      %v288 = vrot.slane %v287, 2
      %v289 = vadd.f32 %v287, %v288
      %v290 = vrot.slane %v289, 1
      %v291 = vadd.f32 %v289, %v290
      %v292 = vrcp.pop 4.0
      %v293 = vmul.f32 %v284, %v292
      %v294 = vmul.f32 %v291, %v292
      %v295 = vsel %vm277, %v272, -inf
      %v296 = vrot.slane %v295, 4
      %v297 = vmax.f32 %v295, %v296
      %v298 = vrot.slane %v297, 2
      %v299 = vmax.f32 %v297, %v298
      %v300 = vrot.slane %v299, 1
      %v301 = vmax.f32 %v299, %v300
      %v302 = vsel %vm277, %v275, -inf
      %v303 = vrot.slane %v302, 4
      %v304 = vmax.f32 %v302, %v303
      %v305 = vrot.slane %v304, 2
      %v306 = vmax.f32 %v304, %v305
      %v307 = vrot.slane %v306, 1
      %v308 = vmax.f32 %v306, %v307
      %v309 = vld [vmem:[%s2] ss:$2 sm:$0x3]
      %v311 = vlaneseq
      %v312 = vshrl.u32 %v311, 7
      %v313 = vsub.s32 0, %v312
      %v314 = vrot.slane %v309, %v313
      %v315 = vlaneseq
      %v316 = vshrl.u32 %v315, 7
      %v317 = vsub.s32 1, %v316
      %v318 = vrot.slane %v309, %v317
      %v321 = vadd.f32 %v293, %v314
      %v322 = vadd.f32 %v294, %v318
      %s323 = scalar_lea.vmem %s2, 1
      %v324 = vld [vmem:[%s323] ss:$2 sm:$0x3]
      %v326 = vlaneseq
      %v327 = vshrl.u32 %v326, 7
      %v328 = vsub.s32 0, %v327
      %v329 = vrot.slane %v324, %v328
      %v330 = vlaneseq
      %v331 = vshrl.u32 %v330, 7
      %v332 = vsub.s32 1, %v331
      %v333 = vrot.slane %v324, %v332
      %v336 = vadd.f32 %v301, %v329
      %v337 = vadd.f32 %v308, %v333
      %338 = vrot.lane.b32.xlu0 %v321, 3
      %v339 = vpop.permute.xlu0 %338
      %340 = vrot.lane.b32.xlu0 %v322, 3
      %v341 = vpop.permute.xlu0 %340
      %v342 = vlaneseq
      %v343 = vand.u32 %v342, 127
      %vm344 = vcmp.lt.s32.totalorder %v343, 3
      %v345 = vsel %vm344, %v339, %v341
      %v346 = vsel %vm344, %v341, %v339
      %v347 = vld [vmem:[%s0] ss:$8 sm:$0x3]
      %v349 = vlaneseq
      %v350 = vshrl.u32 %v349, 7
      %v351 = vsub.s32 0, %v350
      %v352 = vrot.slane %v347, %v351
      %v353 = vlaneseq
      %v354 = vshrl.u32 %v353, 7
      %v355 = vsub.s32 1, %v354
      %v356 = vrot.slane %v347, %v355
      %v359 = vmul.f32 %v346, %v352
      %v360 = vmul.f32 %v345, %v356
      %361 = vrot.lane.b32.xlu0 %v321, 2
      %v362 = vpop.permute.xlu0 %361
      %363 = vrot.lane.b32.xlu0 %v322, 2
      %v364 = vpop.permute.xlu0 %363
      %vm365 = vcmp.lt.s32.totalorder %v343, 2
      %v366 = vsel %vm365, %v362, %v364
      %v367 = vsel %vm365, %v364, %v362
      %s368 = scalar_lea.vmem %s0, 1
      %v369 = vld [vmem:[%s368] ss:$8 sm:$0x3]
      %v371 = vlaneseq
      %v372 = vshrl.u32 %v371, 7
      %v373 = vsub.s32 0, %v372
      %v374 = vrot.slane %v369, %v373
      %v375 = vlaneseq
      %v376 = vshrl.u32 %v375, 7
      %v377 = vsub.s32 1, %v376
      %v378 = vrot.slane %v369, %v377
      %v381 = vmul.f32 %v367, %v374
      %v382 = vmul.f32 %v366, %v378
      %383 = vrot.lane.b32.xlu0 %v321, 1
      %v384 = vpop.permute.xlu0 %383
      %385 = vrot.lane.b32.xlu0 %v322, 1
      %v386 = vpop.permute.xlu0 %385
      %vm387 = vcmp.lt.s32.totalorder %v343, 1
      %v388 = vsel %vm387, %v384, %v386
      %v389 = vsel %vm387, %v386, %v384
      %s390 = scalar_lea.vmem %s0, 2
      %v391 = vld [vmem:[%s390] ss:$8 sm:$0x3]
      %v393 = vlaneseq
      %v394 = vshrl.u32 %v393, 7
      %v395 = vsub.s32 0, %v394
      %v396 = vrot.slane %v391, %v395
      %v397 = vlaneseq
      %v398 = vshrl.u32 %v397, 7
      %v399 = vsub.s32 1, %v398
      %v400 = vrot.slane %v391, %v399
      %v403 = vmul.f32 %v389, %v396
      %v404 = vmul.f32 %v388, %v400
      %s405 = scalar_lea.vmem %s0, 3
      %v406 = vld [vmem:[%s405] ss:$8 sm:$0x3]
      %v408 = vlaneseq
      %v409 = vshrl.u32 %v408, 7
      %v410 = vsub.s32 0, %v409
      %v411 = vrot.slane %v406, %v410
      %v412 = vlaneseq
      %v413 = vshrl.u32 %v412, 7
      %v414 = vsub.s32 1, %v413
      %v415 = vrot.slane %v406, %v414
      %v418 = vmul.f32 %v321, %v411
      %v419 = vmul.f32 %v322, %v415
      %420 = vrot.lane.b32.xlu0 %v321, 127
      %v421 = vpop.permute.xlu0 %420
      %422 = vrot.lane.b32.xlu0 %v322, 127
      %v423 = vpop.permute.xlu0 %422
      %vm424 = vcmp.lt.s32.totalorder %v343, 127
      %v425 = vsel %vm424, %v421, %v423
      %v426 = vsel %vm424, %v423, %v421
      %s427 = scalar_lea.vmem %s0, 4
      %v428 = vld [vmem:[%s427] ss:$8 sm:$0x3]
      %v430 = vlaneseq
      %v431 = vshrl.u32 %v430, 7
      %v432 = vsub.s32 0, %v431
      %v433 = vrot.slane %v428, %v432
      %v434 = vlaneseq
      %v435 = vshrl.u32 %v434, 7
      %v436 = vsub.s32 1, %v435
      %v437 = vrot.slane %v428, %v436
      %v440 = vmul.f32 %v425, %v433
      %v441 = vmul.f32 %v426, %v437
      %442 = vrot.lane.b32.xlu0 %v321, 126
      %v443 = vpop.permute.xlu0 %442
      %444 = vrot.lane.b32.xlu0 %v322, 126
      %v445 = vpop.permute.xlu0 %444
      %vm446 = vcmp.lt.s32.totalorder %v343, 126
      %v447 = vsel %vm446, %v443, %v445
      %v448 = vsel %vm446, %v445, %v443
      %s449 = scalar_lea.vmem %s0, 5
      %v450 = vld [vmem:[%s449] ss:$8 sm:$0x3]
      %v452 = vlaneseq
      %v453 = vshrl.u32 %v452, 7
      %v454 = vsub.s32 0, %v453
      %v455 = vrot.slane %v450, %v454
      %v456 = vlaneseq
      %v457 = vshrl.u32 %v456, 7
      %v458 = vsub.s32 1, %v457
      %v459 = vrot.slane %v450, %v458
      %v462 = vmul.f32 %v447, %v455
      %v463 = vmul.f32 %v448, %v459
      %464 = vrot.lane.b32.xlu0 %v321, 125
      %v465 = vpop.permute.xlu0 %464
      %466 = vrot.lane.b32.xlu0 %v322, 125
      %v467 = vpop.permute.xlu0 %466
      %vm468 = vcmp.lt.s32.totalorder %v343, 125
      %v469 = vsel %vm468, %v465, %v467
      %v470 = vsel %vm468, %v467, %v465
      %s471 = scalar_lea.vmem %s0, 6
      %v472 = vld [vmem:[%s471] ss:$8 sm:$0x3]
      %v474 = vlaneseq
      %v475 = vshrl.u32 %v474, 7
      %v476 = vsub.s32 0, %v475
      %v477 = vrot.slane %v472, %v476
      %v478 = vlaneseq
      %v479 = vshrl.u32 %v478, 7
      %v480 = vsub.s32 1, %v479
      %v481 = vrot.slane %v472, %v480
      %v484 = vmul.f32 %v469, %v477
      %v485 = vmul.f32 %v470, %v481
      %486 = vrot.lane.b32.xlu0 %v336, 3
      %v487 = vpop.permute.xlu0 %486
      %488 = vrot.lane.b32.xlu0 %v337, 3
      %v489 = vpop.permute.xlu0 %488
      %v490 = vsel %vm344, %v487, %v489
      %v491 = vsel %vm344, %v489, %v487
      %v492 = vmul.f32 %v491, %v352
      %v493 = vmul.f32 %v490, %v356
      %494 = vrot.lane.b32.xlu0 %v336, 2
      %v495 = vpop.permute.xlu0 %494
      %496 = vrot.lane.b32.xlu0 %v337, 2
      %v497 = vpop.permute.xlu0 %496
      %v498 = vsel %vm365, %v495, %v497
      %v499 = vsel %vm365, %v497, %v495
      %v500 = vmul.f32 %v499, %v374
      %v501 = vmul.f32 %v498, %v378
      %502 = vrot.lane.b32.xlu0 %v336, 1
      %v503 = vpop.permute.xlu0 %502
      %504 = vrot.lane.b32.xlu0 %v337, 1
      %v505 = vpop.permute.xlu0 %504
      %v506 = vsel %vm387, %v503, %v505
      %v507 = vsel %vm387, %v505, %v503
      %v508 = vmul.f32 %v507, %v396
      %v509 = vmul.f32 %v506, %v400
      %v510 = vmul.f32 %v336, %v411
      %v511 = vmul.f32 %v337, %v415
      %512 = vrot.lane.b32.xlu0 %v336, 127
      %v513 = vpop.permute.xlu0 %512
      %514 = vrot.lane.b32.xlu0 %v337, 127
      %v515 = vpop.permute.xlu0 %514
      %v516 = vsel %vm424, %v513, %v515
      %v517 = vsel %vm424, %v515, %v513
      %v518 = vmul.f32 %v516, %v433
      %v519 = vmul.f32 %v517, %v437
      %520 = vrot.lane.b32.xlu0 %v336, 126
      %v521 = vpop.permute.xlu0 %520
      %522 = vrot.lane.b32.xlu0 %v337, 126
      %v523 = vpop.permute.xlu0 %522
      %v524 = vsel %vm446, %v521, %v523
      %v525 = vsel %vm446, %v523, %v521
      %v526 = vmul.f32 %v524, %v455
      %v527 = vmul.f32 %v525, %v459
      %528 = vrot.lane.b32.xlu0 %v336, 125
      %v529 = vpop.permute.xlu0 %528
      %530 = vrot.lane.b32.xlu0 %v337, 125
      %v531 = vpop.permute.xlu0 %530
      %v532 = vsel %vm468, %v529, %v531
      %v533 = vsel %vm468, %v531, %v529
      %v534 = vmul.f32 %v532, %v477
      %v535 = vmul.f32 %v533, %v481
      %v538 = vrot.slane %v381, 7
      %v539 = vrot.slane %v382, 7
      %v544 = vrot.slane %v403, 6
      %v545 = vrot.slane %v404, 6
      %v550 = vrot.slane %v418, 5
      %v551 = vrot.slane %v419, 5
      %v556 = vrot.slane %v440, 4
      %v557 = vrot.slane %v441, 4
      %v562 = vrot.slane %v462, 3
      %v563 = vrot.slane %v463, 3
      %v568 = vrot.slane %v484, 2
      %v569 = vrot.slane %v485, 2
      %v574 = vrot.slane %v492, 1
      %v575 = vrot.slane %v493, 1
      %v580 = vrot.slane %v508, 7
      %v581 = vrot.slane %v509, 7
      %v586 = vrot.slane %v510, 6
      %v587 = vrot.slane %v511, 6
      %v592 = vrot.slane %v518, 5
      %v593 = vrot.slane %v519, 5
      %v598 = vrot.slane %v526, 4
      %v599 = vrot.slane %v527, 4
      %v604 = vrot.slane %v534, 3
      %v605 = vrot.slane %v535, 3
      %vm608 = vcmask 1040384
      %v609 = vsel %vm608, %v359, %v538
      %v610 = vsel %vm608, %v360, %v539
      %vm611 = vcmask 1041408
      %v612 = vsel %vm611, %v609, %v544
      %v613 = vsel %vm611, %v610, %v545
      %vm614 = vcmask 1042432
      %v615 = vsel %vm614, %v612, %v550
      %v616 = vsel %vm614, %v613, %v551
      %v617 = vsel %vm277, %v615, %v556
      %v618 = vsel %vm277, %v616, %v557
      %vm619 = vcmask 1044480
      %v620 = vsel %vm619, %v617, %v562
      %v621 = vsel %vm619, %v618, %v563
      %vm622 = vcmask 1045504
      %v623 = vsel %vm622, %v620, %v568
      %v624 = vsel %vm622, %v621, %v569
      %vm625 = vcmask 1046528
      %v626 = vsel %vm625, %v623, %v574
      %v627 = vsel %vm625, %v624, %v575
      %v628 = vsel %vm608, %v500, %v580
      %v629 = vsel %vm608, %v501, %v581
      %v630 = vsel %vm611, %v628, %v586
      %v631 = vsel %vm611, %v629, %v587
      %v632 = vsel %vm614, %v630, %v592
      %v633 = vsel %vm614, %v631, %v593
      %v634 = vsel %vm277, %v632, %v598
      %v635 = vsel %vm277, %v633, %v599
      %v636 = vsel %vm619, %v634, %v604
      %v637 = vsel %vm619, %v635, %v605
      %v638 = vsel %vm622, %v636, 0.0
      %v639 = vsel %vm622, %v637, 0.0
      %v640 = vsel %vm625, %v638, 0.0
      %v641 = vsel %vm625, %v639, 0.0
      %v642 = vld [vmem:[%s3] sm:$0xff]
      %vm643 = vcmask 130048
      %v645 = vsel %vm643, %v642, 0
      %v647 = vand.u32 %v627, 4294901760
      %648 = vmatprep.subr.mxu0 %v647
      %v649 = vand.u32 %v626, 4294901760
      %650 = vmatpush1.msra.mxu0 %v649
      %v651 = vand.u32 %v641, 4294901760
      %652 = vmatprep.subr.mxu0 %v651
      %v653 = vand.u32 %v640, 4294901760
      %654 = vmatpush1.msra.mxu0 %v653
      %655 = vmatprep.subr.mxu0 0.0
      %656 = vmatpush1.msra.mxu0 0.0
      %657 = vmatprep.subr.mxu0 0.0
      %658 = vmatpush1.msra.mxu0 0.0
      %659 = vmatprep.subr.mxu0 0.0
      %660 = vmatpush1.msra.mxu0 0.0
      %661 = vmatprep.subr.mxu0 0.0
      %662 = vmatpush1.msra.mxu0 0.0
      %663 = vmatprep.subr.mxu0 0.0
      %664 = vmatpush1.msra.mxu0 0.0
      %665 = vmatprep.subr.mxu0 0.0
      %666 = vmatpush1.msra.mxu0 0.0
      %667 = vmatprep.subr.mxu0 0.0
      %668 = vmatpush1.msra.mxu0 0.0
      %669 = vmatprep.subr.mxu0 0.0
      %670 = vmatpush1.msra.mxu0 0.0
      %671 = vmatprep.subr.mxu0 0.0
      %672 = vmatpush1.msra.mxu0 0.0
      %673 = vmatprep.subr.mxu0 0.0
      %674 = vmatpush1.msra.mxu0 0.0
      %675 = vmatprep.subr.mxu0 0.0
      %676 = vmatpush1.msra.mxu0 0.0
      %677 = vmatprep.subr.mxu0 0.0
      %678 = vmatpush1.msra.mxu0 0.0
      %679 = vmatprep.subr.mxu0 0.0
      %680 = vmatpush1.msra.mxu0 0.0
      %681 = vmatprep.subr.mxu0 0.0
      %682 = vmatpush1.msra.mxu0 0.0
      %683 = vmatprep.subr.mxu0 0.0
      %684 = vmatpush1.msra.mxu0 0.0
      %685 = vmatprep.subr.mxu0 0.0
      %686 = vmatpush1.msra.mxu0 0.0
      %687 = vmatprep.subr.mxu0 0.0
      %688 = vmatpush1.msra.mxu0 0.0
      %689 = vmatprep.subr.mxu0 0.0
      %690 = vmatpush1.msra.mxu0 0.0
      %691 = vmatprep.subr.mxu0 0.0
      %692 = vmatpush1.msra.mxu0 0.0
      %693 = vmatprep.subr.mxu0 0.0
      %694 = vmatpush1.msra.mxu0 0.0
      %695 = vmatprep.subr.mxu0 0.0
      %696 = vmatpush1.msra.mxu0 0.0
      %697 = vmatprep.subr.mxu0 0.0
      %698 = vmatpush1.msra.mxu0 0.0
      %699 = vmatprep.subr.mxu0 0.0
      %700 = vmatpush1.msra.mxu0 0.0
      %701 = vmatprep.subr.mxu0 0.0
      %702 = vmatpush1.msra.mxu0 0.0
      %703 = vmatprep.subr.mxu0 0.0
      %704 = vmatpush1.msra.mxu0 0.0
      %705 = vmatprep.subr.mxu0 0.0
      %706 = vmatpush1.msra.mxu0 0.0
      %707 = vmatprep.subr.mxu0 0.0
      %708 = vmatpush1.msra.mxu0 0.0
      %709 = vmatprep.subr.mxu0 0.0
      %710 = vmatpush1.msra.mxu0 0.0
      %711 = vmatprep.subr.mxu0 0.0
      %712 = vmatpush1.msra.mxu0 0.0
      %713 = vmatprep.subr.mxu0 0.0
      %714 = vmatpush1.msra.mxu0 0.0
      %715 = vmatprep.mubr.f32.mxu0 0.0
      %v716 = vand.u32 %v645, 4294901760
      %v717 = vsub.f32 %v645, %v716
      %v718 = vand.u32 %v717, 4294901760
      %v719 = vsub.f32 %v717, %v718
      %v720 = vand.u32 %v719, 4294901760
      %721 = vmatmul.mubr.f32.gmra.mrb[0].mxu0 %v720
      %v722 = vpop.f32.mrb[0].mxu0
      %v723 = vadd.f32 0.0, %v722
      %v724 = vpop.f32.mrb[0].mxu0
      %v725 = vadd.f32 0.0, %v724
      %726 = vdwg.mxu0
      %v727 = vand.u32 %v627, 4294901760
      %v728 = vsub.f32 %v627, %v727
      %v729 = vand.u32 %v728, 4294901760
      %v730 = vsub.f32 %v728, %v729
      %v731 = vand.u32 %v730, 4294901760
      %732 = vmatprep.subr.mxu0 %v731
      %v733 = vand.u32 %v626, 4294901760
      %v734 = vsub.f32 %v626, %v733
      %v735 = vand.u32 %v734, 4294901760
      %v736 = vsub.f32 %v734, %v735
      %v737 = vand.u32 %v736, 4294901760
      %738 = vmatpush1.msra.mxu0 %v737
      %v739 = vand.u32 %v641, 4294901760
      %v740 = vsub.f32 %v641, %v739
      %v741 = vand.u32 %v740, 4294901760
      %v742 = vsub.f32 %v740, %v741
      %v743 = vand.u32 %v742, 4294901760
      %744 = vmatprep.subr.mxu0 %v743
      %v745 = vand.u32 %v640, 4294901760
      %v746 = vsub.f32 %v640, %v745
      %v747 = vand.u32 %v746, 4294901760
      %v748 = vsub.f32 %v746, %v747
      %v749 = vand.u32 %v748, 4294901760
      %750 = vmatpush1.msra.mxu0 %v749
      %751 = vmatprep.subr.mxu0 0.0
      %752 = vmatpush1.msra.mxu0 0.0
      %753 = vmatprep.subr.mxu0 0.0
      %754 = vmatpush1.msra.mxu0 0.0
      %755 = vmatprep.subr.mxu0 0.0
      %756 = vmatpush1.msra.mxu0 0.0
      %757 = vmatprep.subr.mxu0 0.0
      %758 = vmatpush1.msra.mxu0 0.0
      %759 = vmatprep.subr.mxu0 0.0
      %760 = vmatpush1.msra.mxu0 0.0
      %761 = vmatprep.subr.mxu0 0.0
      %762 = vmatpush1.msra.mxu0 0.0
      %763 = vmatprep.subr.mxu0 0.0
      %764 = vmatpush1.msra.mxu0 0.0
      %765 = vmatprep.subr.mxu0 0.0
      %766 = vmatpush1.msra.mxu0 0.0
      %767 = vmatprep.subr.mxu0 0.0
      %768 = vmatpush1.msra.mxu0 0.0
      %769 = vmatprep.subr.mxu0 0.0
      %770 = vmatpush1.msra.mxu0 0.0
      %771 = vmatprep.subr.mxu0 0.0
      %772 = vmatpush1.msra.mxu0 0.0
      %773 = vmatprep.subr.mxu0 0.0
      %774 = vmatpush1.msra.mxu0 0.0
      %775 = vmatprep.subr.mxu0 0.0
      %776 = vmatpush1.msra.mxu0 0.0
      %777 = vmatprep.subr.mxu0 0.0
      %778 = vmatpush1.msra.mxu0 0.0
      %779 = vmatprep.subr.mxu0 0.0
      %780 = vmatpush1.msra.mxu0 0.0
      %781 = vmatprep.subr.mxu0 0.0
      %782 = vmatpush1.msra.mxu0 0.0
      %783 = vmatprep.subr.mxu0 0.0
      %784 = vmatpush1.msra.mxu0 0.0
      %785 = vmatprep.subr.mxu0 0.0
      %786 = vmatpush1.msra.mxu0 0.0
      %787 = vmatprep.subr.mxu0 0.0
      %788 = vmatpush1.msra.mxu0 0.0
      %789 = vmatprep.subr.mxu0 0.0
      %790 = vmatpush1.msra.mxu0 0.0
      %791 = vmatprep.subr.mxu0 0.0
      %792 = vmatpush1.msra.mxu0 0.0
      %793 = vmatprep.subr.mxu0 0.0
      %794 = vmatpush1.msra.mxu0 0.0
      %795 = vmatprep.subr.mxu0 0.0
      %796 = vmatpush1.msra.mxu0 0.0
      %797 = vmatprep.subr.mxu0 0.0
      %798 = vmatpush1.msra.mxu0 0.0
      %799 = vmatprep.subr.mxu0 0.0
      %800 = vmatpush1.msra.mxu0 0.0
      %801 = vmatprep.subr.mxu0 0.0
      %802 = vmatpush1.msra.mxu0 0.0
      %803 = vmatprep.subr.mxu0 0.0
      %804 = vmatpush1.msra.mxu0 0.0
      %805 = vmatprep.subr.mxu0 0.0
      %806 = vmatpush1.msra.mxu0 0.0
      %807 = vmatprep.subr.mxu0 0.0
      %808 = vmatpush1.msra.mxu0 0.0
      %809 = vmatprep.subr.mxu0 0.0
      %810 = vmatpush1.msra.mxu0 0.0
      %811 = vmatprep.mubr.f32.mxu0 0.0
      %v812 = vand.u32 %v645, 4294901760
      %813 = vmatmul.mubr.f32.gmra.mrb[0].mxu0 %v812
      %v814 = vpop.f32.mrb[0].mxu0
      %v815 = vadd.f32 %v723, %v814
      %v816 = vpop.f32.mrb[0].mxu0
      %v817 = vadd.f32 %v725, %v816
      %818 = vdwg.mxu0
      %v819 = vand.u32 %v627, 4294901760
      %v820 = vsub.f32 %v627, %v819
      %821 = vmatprep.subr.mxu0 %v820
      %v822 = vand.u32 %v626, 4294901760
      %v823 = vsub.f32 %v626, %v822
      %824 = vmatpush1.msra.mxu0 %v823
      %v825 = vand.u32 %v641, 4294901760
      %v826 = vsub.f32 %v641, %v825
      %827 = vmatprep.subr.mxu0 %v826
      %v828 = vand.u32 %v640, 4294901760
      %v829 = vsub.f32 %v640, %v828
      %830 = vmatpush1.msra.mxu0 %v829
      %831 = vmatprep.subr.mxu0 0.0
      %832 = vmatpush1.msra.mxu0 0.0
      %833 = vmatprep.subr.mxu0 0.0
      %834 = vmatpush1.msra.mxu0 0.0
      %835 = vmatprep.subr.mxu0 0.0
      %836 = vmatpush1.msra.mxu0 0.0
      %837 = vmatprep.subr.mxu0 0.0
      %838 = vmatpush1.msra.mxu0 0.0
      %839 = vmatprep.subr.mxu0 0.0
      %840 = vmatpush1.msra.mxu0 0.0
      %841 = vmatprep.subr.mxu0 0.0
      %842 = vmatpush1.msra.mxu0 0.0
      %843 = vmatprep.subr.mxu0 0.0
      %844 = vmatpush1.msra.mxu0 0.0
      %845 = vmatprep.subr.mxu0 0.0
      %846 = vmatpush1.msra.mxu0 0.0
      %847 = vmatprep.subr.mxu0 0.0
      %848 = vmatpush1.msra.mxu0 0.0
      %849 = vmatprep.subr.mxu0 0.0
      %850 = vmatpush1.msra.mxu0 0.0
      %851 = vmatprep.subr.mxu0 0.0
      %852 = vmatpush1.msra.mxu0 0.0
      %853 = vmatprep.subr.mxu0 0.0
      %854 = vmatpush1.msra.mxu0 0.0
      %855 = vmatprep.subr.mxu0 0.0
      %856 = vmatpush1.msra.mxu0 0.0
      %857 = vmatprep.subr.mxu0 0.0
      %858 = vmatpush1.msra.mxu0 0.0
      %859 = vmatprep.subr.mxu0 0.0
      %860 = vmatpush1.msra.mxu0 0.0
      %861 = vmatprep.subr.mxu0 0.0
      %862 = vmatpush1.msra.mxu0 0.0
      %863 = vmatprep.subr.mxu0 0.0
      %864 = vmatpush1.msra.mxu0 0.0
      %865 = vmatprep.subr.mxu0 0.0
      %866 = vmatpush1.msra.mxu0 0.0
      %867 = vmatprep.subr.mxu0 0.0
      %868 = vmatpush1.msra.mxu0 0.0
      %869 = vmatprep.subr.mxu0 0.0
      %870 = vmatpush1.msra.mxu0 0.0
      %871 = vmatprep.subr.mxu0 0.0
      %872 = vmatpush1.msra.mxu0 0.0
      %873 = vmatprep.subr.mxu0 0.0
      %874 = vmatpush1.msra.mxu0 0.0
      %875 = vmatprep.subr.mxu0 0.0
      %876 = vmatpush1.msra.mxu0 0.0
      %877 = vmatprep.subr.mxu0 0.0
      %878 = vmatpush1.msra.mxu0 0.0
      %879 = vmatprep.subr.mxu0 0.0
      %880 = vmatpush1.msra.mxu0 0.0
      %881 = vmatprep.subr.mxu0 0.0
      %882 = vmatpush1.msra.mxu0 0.0
      %883 = vmatprep.subr.mxu0 0.0
      %884 = vmatpush1.msra.mxu0 0.0
      %885 = vmatprep.subr.mxu0 0.0
      %886 = vmatpush1.msra.mxu0 0.0
      %887 = vmatprep.subr.mxu0 0.0
      %888 = vmatpush1.msra.mxu0 0.0
      %889 = vmatprep.subr.mxu0 0.0
      %890 = vmatpush1.msra.mxu0 0.0
      %891 = vmatprep.mubr.f32.mxu0 0.0
      %v892 = vand.u32 %v645, 4294901760
      %v893 = vsub.f32 %v645, %v892
      %894 = vmatmul.mubr.f32.gmra.mrb[0].mxu0 %v893
      %v895 = vpop.f32.mrb[0].mxu0
      %v896 = vadd.f32 %v815, %v895
      %v897 = vpop.f32.mrb[0].mxu0
      %v898 = vadd.f32 %v817, %v897
      %899 = vdwg.mxu0
      %v900 = vand.u32 %v627, 4294901760
      %901 = vmatprep.subr.mxu0 %v900
      %v902 = vand.u32 %v626, 4294901760
      %903 = vmatpush1.msra.mxu0 %v902
      %v904 = vand.u32 %v641, 4294901760
      %905 = vmatprep.subr.mxu0 %v904
      %v906 = vand.u32 %v640, 4294901760
      %907 = vmatpush1.msra.mxu0 %v906
      %908 = vmatprep.subr.mxu0 0.0
      %909 = vmatpush1.msra.mxu0 0.0
      %910 = vmatprep.subr.mxu0 0.0
      %911 = vmatpush1.msra.mxu0 0.0
      %912 = vmatprep.subr.mxu0 0.0
      %913 = vmatpush1.msra.mxu0 0.0
      %914 = vmatprep.subr.mxu0 0.0
      %915 = vmatpush1.msra.mxu0 0.0
      %916 = vmatprep.subr.mxu0 0.0
      %917 = vmatpush1.msra.mxu0 0.0
      %918 = vmatprep.subr.mxu0 0.0
      %919 = vmatpush1.msra.mxu0 0.0
      %920 = vmatprep.subr.mxu0 0.0
      %921 = vmatpush1.msra.mxu0 0.0
      %922 = vmatprep.subr.mxu0 0.0
      %923 = vmatpush1.msra.mxu0 0.0
      %924 = vmatprep.subr.mxu0 0.0
      %925 = vmatpush1.msra.mxu0 0.0
      %926 = vmatprep.subr.mxu0 0.0
      %927 = vmatpush1.msra.mxu0 0.0
      %928 = vmatprep.subr.mxu0 0.0
      %929 = vmatpush1.msra.mxu0 0.0
      %930 = vmatprep.subr.mxu0 0.0
      %931 = vmatpush1.msra.mxu0 0.0
      %932 = vmatprep.subr.mxu0 0.0
      %933 = vmatpush1.msra.mxu0 0.0
      %934 = vmatprep.subr.mxu0 0.0
      %935 = vmatpush1.msra.mxu0 0.0
      %936 = vmatprep.subr.mxu0 0.0
      %937 = vmatpush1.msra.mxu0 0.0
      %938 = vmatprep.subr.mxu0 0.0
      %939 = vmatpush1.msra.mxu0 0.0
      %940 = vmatprep.subr.mxu0 0.0
      %941 = vmatpush1.msra.mxu0 0.0
      %942 = vmatprep.subr.mxu0 0.0
      %943 = vmatpush1.msra.mxu0 0.0
      %944 = vmatprep.subr.mxu0 0.0
      %945 = vmatpush1.msra.mxu0 0.0
      %946 = vmatprep.subr.mxu0 0.0
      %947 = vmatpush1.msra.mxu0 0.0
      %948 = vmatprep.subr.mxu0 0.0
      %949 = vmatpush1.msra.mxu0 0.0
      %950 = vmatprep.subr.mxu0 0.0
      %951 = vmatpush1.msra.mxu0 0.0
      %952 = vmatprep.subr.mxu0 0.0
      %953 = vmatpush1.msra.mxu0 0.0
      %954 = vmatprep.subr.mxu0 0.0
      %955 = vmatpush1.msra.mxu0 0.0
      %956 = vmatprep.subr.mxu0 0.0
      %957 = vmatpush1.msra.mxu0 0.0
      %958 = vmatprep.subr.mxu0 0.0
      %959 = vmatpush1.msra.mxu0 0.0
      %960 = vmatprep.subr.mxu0 0.0
      %961 = vmatpush1.msra.mxu0 0.0
      %962 = vmatprep.subr.mxu0 0.0
      %963 = vmatpush1.msra.mxu0 0.0
      %964 = vmatprep.subr.mxu0 0.0
      %965 = vmatpush1.msra.mxu0 0.0
      %966 = vmatprep.subr.mxu0 0.0
      %967 = vmatpush1.msra.mxu0 0.0
      %968 = vmatprep.mubr.f32.mxu0 0.0
      %v969 = vand.u32 %v645, 4294901760
      %v970 = vsub.f32 %v645, %v969
      %v971 = vand.u32 %v970, 4294901760
      %972 = vmatmul.mubr.f32.gmra.mrb[0].mxu0 %v971
      %v973 = vpop.f32.mrb[0].mxu0
      %v974 = vadd.f32 %v896, %v973
      %v975 = vpop.f32.mrb[0].mxu0
      %v976 = vadd.f32 %v898, %v975
      %977 = vdwg.mxu0
      %v978 = vand.u32 %v627, 4294901760
      %v979 = vsub.f32 %v627, %v978
      %v980 = vand.u32 %v979, 4294901760
      %981 = vmatprep.subr.mxu0 %v980
      %v982 = vand.u32 %v626, 4294901760
      %v983 = vsub.f32 %v626, %v982
      %v984 = vand.u32 %v983, 4294901760
      %985 = vmatpush1.msra.mxu0 %v984
      %v986 = vand.u32 %v641, 4294901760
      %v987 = vsub.f32 %v641, %v986
      %v988 = vand.u32 %v987, 4294901760
      %989 = vmatprep.subr.mxu0 %v988
      %v990 = vand.u32 %v640, 4294901760
      %v991 = vsub.f32 %v640, %v990
      %v992 = vand.u32 %v991, 4294901760
      %993 = vmatpush1.msra.mxu0 %v992
      %994 = vmatprep.subr.mxu0 0.0
      %995 = vmatpush1.msra.mxu0 0.0
      %996 = vmatprep.subr.mxu0 0.0
      %997 = vmatpush1.msra.mxu0 0.0
      %998 = vmatprep.subr.mxu0 0.0
      %999 = vmatpush1.msra.mxu0 0.0
      %1000 = vmatprep.subr.mxu0 0.0
      %1001 = vmatpush1.msra.mxu0 0.0
      %1002 = vmatprep.subr.mxu0 0.0
      %1003 = vmatpush1.msra.mxu0 0.0
      %1004 = vmatprep.subr.mxu0 0.0
      %1005 = vmatpush1.msra.mxu0 0.0
      %1006 = vmatprep.subr.mxu0 0.0
      %1007 = vmatpush1.msra.mxu0 0.0
      %1008 = vmatprep.subr.mxu0 0.0
      %1009 = vmatpush1.msra.mxu0 0.0
      %1010 = vmatprep.subr.mxu0 0.0
      %1011 = vmatpush1.msra.mxu0 0.0
      %1012 = vmatprep.subr.mxu0 0.0
      %1013 = vmatpush1.msra.mxu0 0.0
      %1014 = vmatprep.subr.mxu0 0.0
      %1015 = vmatpush1.msra.mxu0 0.0
      %1016 = vmatprep.subr.mxu0 0.0
      %1017 = vmatpush1.msra.mxu0 0.0
      %1018 = vmatprep.subr.mxu0 0.0
      %1019 = vmatpush1.msra.mxu0 0.0
      %1020 = vmatprep.subr.mxu0 0.0
      %1021 = vmatpush1.msra.mxu0 0.0
      %1022 = vmatprep.subr.mxu0 0.0
      %1023 = vmatpush1.msra.mxu0 0.0
      %1024 = vmatprep.subr.mxu0 0.0
      %1025 = vmatpush1.msra.mxu0 0.0
      %1026 = vmatprep.subr.mxu0 0.0
      %1027 = vmatpush1.msra.mxu0 0.0
      %1028 = vmatprep.subr.mxu0 0.0
      %1029 = vmatpush1.msra.mxu0 0.0
      %1030 = vmatprep.subr.mxu0 0.0
      %1031 = vmatpush1.msra.mxu0 0.0
      %1032 = vmatprep.subr.mxu0 0.0
      %1033 = vmatpush1.msra.mxu0 0.0
      %1034 = vmatprep.subr.mxu0 0.0
      %1035 = vmatpush1.msra.mxu0 0.0
      %1036 = vmatprep.subr.mxu0 0.0
      %1037 = vmatpush1.msra.mxu0 0.0
      %1038 = vmatprep.subr.mxu0 0.0
      %1039 = vmatpush1.msra.mxu0 0.0
      %1040 = vmatprep.subr.mxu0 0.0
      %1041 = vmatpush1.msra.mxu0 0.0
      %1042 = vmatprep.subr.mxu0 0.0
      %1043 = vmatpush1.msra.mxu0 0.0
      %1044 = vmatprep.subr.mxu0 0.0
      %1045 = vmatpush1.msra.mxu0 0.0
      %1046 = vmatprep.subr.mxu0 0.0
      %1047 = vmatpush1.msra.mxu0 0.0
      %1048 = vmatprep.subr.mxu0 0.0
      %1049 = vmatpush1.msra.mxu0 0.0
      %1050 = vmatprep.subr.mxu0 0.0
      %1051 = vmatpush1.msra.mxu0 0.0
      %1052 = vmatprep.subr.mxu0 0.0
      %1053 = vmatpush1.msra.mxu0 0.0
      %1054 = vmatprep.mubr.f32.mxu0 0.0
      %v1055 = vand.u32 %v645, 4294901760
      %1056 = vmatmul.mubr.f32.gmra.mrb[0].mxu0 %v1055
      %v1057 = vpop.f32.mrb[0].mxu0
      %v1058 = vadd.f32 %v974, %v1057
      %v1059 = vpop.f32.mrb[0].mxu0
      %v1060 = vadd.f32 %v976, %v1059
      %1061 = vdwg.mxu0
      %v1062 = vand.u32 %v627, 4294901760
      %1063 = vmatprep.subr.mxu0 %v1062
      %v1064 = vand.u32 %v626, 4294901760
      %1065 = vmatpush1.msra.mxu0 %v1064
      %v1066 = vand.u32 %v641, 4294901760
      %1067 = vmatprep.subr.mxu0 %v1066
      %v1068 = vand.u32 %v640, 4294901760
      %1069 = vmatpush1.msra.mxu0 %v1068
      %1070 = vmatprep.subr.mxu0 0.0
      %1071 = vmatpush1.msra.mxu0 0.0
      %1072 = vmatprep.subr.mxu0 0.0
      %1073 = vmatpush1.msra.mxu0 0.0
      %1074 = vmatprep.subr.mxu0 0.0
      %1075 = vmatpush1.msra.mxu0 0.0
      %1076 = vmatprep.subr.mxu0 0.0
      %1077 = vmatpush1.msra.mxu0 0.0
      %1078 = vmatprep.subr.mxu0 0.0
      %1079 = vmatpush1.msra.mxu0 0.0
      %1080 = vmatprep.subr.mxu0 0.0
      %1081 = vmatpush1.msra.mxu0 0.0
      %1082 = vmatprep.subr.mxu0 0.0
      %1083 = vmatpush1.msra.mxu0 0.0
      %1084 = vmatprep.subr.mxu0 0.0
      %1085 = vmatpush1.msra.mxu0 0.0
      %1086 = vmatprep.subr.mxu0 0.0
      %1087 = vmatpush1.msra.mxu0 0.0
      %1088 = vmatprep.subr.mxu0 0.0
      %1089 = vmatpush1.msra.mxu0 0.0
      %1090 = vmatprep.subr.mxu0 0.0
      %1091 = vmatpush1.msra.mxu0 0.0
      %1092 = vmatprep.subr.mxu0 0.0
      %1093 = vmatpush1.msra.mxu0 0.0
      %1094 = vmatprep.subr.mxu0 0.0
      %1095 = vmatpush1.msra.mxu0 0.0
      %1096 = vmatprep.subr.mxu0 0.0
      %1097 = vmatpush1.msra.mxu0 0.0
      %1098 = vmatprep.subr.mxu0 0.0
      %1099 = vmatpush1.msra.mxu0 0.0
      %1100 = vmatprep.subr.mxu0 0.0
      %1101 = vmatpush1.msra.mxu0 0.0
      %1102 = vmatprep.subr.mxu0 0.0
      %1103 = vmatpush1.msra.mxu0 0.0
      %1104 = vmatprep.subr.mxu0 0.0
      %1105 = vmatpush1.msra.mxu0 0.0
      %1106 = vmatprep.subr.mxu0 0.0
      %1107 = vmatpush1.msra.mxu0 0.0
      %1108 = vmatprep.subr.mxu0 0.0
      %1109 = vmatpush1.msra.mxu0 0.0
      %1110 = vmatprep.subr.mxu0 0.0
      %1111 = vmatpush1.msra.mxu0 0.0
      %1112 = vmatprep.subr.mxu0 0.0
      %1113 = vmatpush1.msra.mxu0 0.0
      %1114 = vmatprep.subr.mxu0 0.0
      %1115 = vmatpush1.msra.mxu0 0.0
      %1116 = vmatprep.subr.mxu0 0.0
      %1117 = vmatpush1.msra.mxu0 0.0
      %1118 = vmatprep.subr.mxu0 0.0
      %1119 = vmatpush1.msra.mxu0 0.0
      %1120 = vmatprep.subr.mxu0 0.0
      %1121 = vmatpush1.msra.mxu0 0.0
      %1122 = vmatprep.subr.mxu0 0.0
      %1123 = vmatpush1.msra.mxu0 0.0
      %1124 = vmatprep.subr.mxu0 0.0
      %1125 = vmatpush1.msra.mxu0 0.0
      %1126 = vmatprep.subr.mxu0 0.0
      %1127 = vmatpush1.msra.mxu0 0.0
      %1128 = vmatprep.subr.mxu0 0.0
      %1129 = vmatpush1.msra.mxu0 0.0
      %1130 = vmatprep.mubr.f32.mxu0 0.0
      %v1131 = vand.u32 %v645, 4294901760
      %1132 = vmatmul.mubr.f32.gmra.mrb[0].mxu0 %v1131
      %v1133 = vpop.f32.mrb[0].mxu0
      %v1134 = vadd.f32 %v1058, %v1133
      %v1135 = vpop.f32.mrb[0].mxu0
      %v1136 = vadd.f32 %v1060, %v1135
      %1137 = vdwg.mxu0
      %1138 = vrot.lane.b32.xlu0 %v1134, 48
      %v1139 = vpop.permute.xlu0 %1138
      %1140 = vrot.lane.b32.xlu0 %v1136, 48
      %v1141 = vpop.permute.xlu0 %1140
      %vm1142 = vcmp.lt.s32.totalorder %v343, 48
      %v1143 = vsel %vm1142, %v1139, %v1141
      %v1144 = vsel %vm1142, %v1141, %v1139
      %v1145 = vld [vmem:[%s1] ss:$8 sm:$0x3]
      %v1147 = vlaneseq
      %v1148 = vshrl.u32 %v1147, 7
      %v1149 = vsub.s32 0, %v1148
      %v1150 = vrot.slane %v1145, %v1149
      %v1151 = vlaneseq
      %v1152 = vshrl.u32 %v1151, 7
      %v1153 = vsub.s32 1, %v1152
      %v1154 = vrot.slane %v1145, %v1153
      %v1157 = vmul.f32 %v1144, %v1150
      %v1158 = vmul.f32 %v1143, %v1154
      %v1161 = vrot.slane %v1134, 1
      %v1162 = vrot.slane %v1136, 1
      %1165 = vrot.lane.b32.xlu0 %v1161, 32
      %v1166 = vpop.permute.xlu0 %1165
      %1167 = vrot.lane.b32.xlu0 %v1162, 32
      %v1168 = vpop.permute.xlu0 %1167
      %vm1169 = vcmp.lt.s32.totalorder %v343, 32
      %v1170 = vsel %vm1169, %v1166, %v1168
      %v1171 = vsel %vm1169, %v1168, %v1166
      %s1172 = scalar_lea.vmem %s1, 1
      %v1173 = vld [vmem:[%s1172] ss:$8 sm:$0x3]
      %v1175 = vlaneseq
      %v1176 = vshrl.u32 %v1175, 7
      %v1177 = vsub.s32 0, %v1176
      %v1178 = vrot.slane %v1173, %v1177
      %v1179 = vlaneseq
      %v1180 = vshrl.u32 %v1179, 7
      %v1181 = vsub.s32 1, %v1180
      %v1182 = vrot.slane %v1173, %v1181
      %v1185 = vmul.f32 %v1171, %v1178
      %v1186 = vmul.f32 %v1170, %v1182
      %v1187 = vrot.slane %v1134, 2
      %v1188 = vrot.slane %v1136, 2
      %1191 = vrot.lane.b32.xlu0 %v1187, 16
      %v1192 = vpop.permute.xlu0 %1191
      %1193 = vrot.lane.b32.xlu0 %v1188, 16
      %v1194 = vpop.permute.xlu0 %1193
      %vm1195 = vcmp.lt.s32.totalorder %v343, 16
      %v1196 = vsel %vm1195, %v1192, %v1194
      %v1197 = vsel %vm1195, %v1194, %v1192
      %s1198 = scalar_lea.vmem %s1, 2
      %v1199 = vld [vmem:[%s1198] ss:$8 sm:$0x3]
      %v1201 = vlaneseq
      %v1202 = vshrl.u32 %v1201, 7
      %v1203 = vsub.s32 0, %v1202
      %v1204 = vrot.slane %v1199, %v1203
      %v1205 = vlaneseq
      %v1206 = vshrl.u32 %v1205, 7
      %v1207 = vsub.s32 1, %v1206
      %v1208 = vrot.slane %v1199, %v1207
      %v1211 = vmul.f32 %v1197, %v1204
      %v1212 = vmul.f32 %v1196, %v1208
      %v1213 = vadd.f32 %v1157, %v1211
      %v1214 = vadd.f32 %v1158, %v1212
      %s1215 = scalar_lea.vmem %s1, 3
      %v1216 = vld [vmem:[%s1215] ss:$8 sm:$0x3]
      %v1218 = vlaneseq
      %v1219 = vshrl.u32 %v1218, 7
      %v1220 = vsub.s32 0, %v1219
      %v1221 = vrot.slane %v1216, %v1220
      %v1222 = vlaneseq
      %v1223 = vshrl.u32 %v1222, 7
      %v1224 = vsub.s32 1, %v1223
      %v1225 = vrot.slane %v1216, %v1224
      %v1228 = vmul.f32 %v1134, %v1221
      %v1229 = vmul.f32 %v1136, %v1225
      %v1232 = vrot.slane %v1228, 3
      %v1233 = vrot.slane %v1229, 3
      %v1236 = vadd.f32 %v1185, %v1232
      %v1237 = vadd.f32 %v1186, %v1233
      %v1238 = vrot.slane %v1134, 4
      %v1239 = vrot.slane %v1136, 4
      %1242 = vrot.lane.b32.xlu0 %v1238, 112
      %v1243 = vpop.permute.xlu0 %1242
      %1244 = vrot.lane.b32.xlu0 %v1239, 112
      %v1245 = vpop.permute.xlu0 %1244
      %vm1246 = vcmp.lt.s32.totalorder %v343, 112
      %v1247 = vsel %vm1246, %v1243, %v1245
      %v1248 = vsel %vm1246, %v1245, %v1243
      %s1249 = scalar_lea.vmem %s1, 4
      %v1250 = vld [vmem:[%s1249] ss:$8 sm:$0x3]
      %v1252 = vlaneseq
      %v1253 = vshrl.u32 %v1252, 7
      %v1254 = vsub.s32 0, %v1253
      %v1255 = vrot.slane %v1250, %v1254
      %v1256 = vlaneseq
      %v1257 = vshrl.u32 %v1256, 7
      %v1258 = vsub.s32 1, %v1257
      %v1259 = vrot.slane %v1250, %v1258
      %v1262 = vmul.f32 %v1247, %v1255
      %v1263 = vmul.f32 %v1248, %v1259
      %v1264 = vadd.f32 %v1213, %v1262
      %v1265 = vadd.f32 %v1214, %v1263
      %v1266 = vrot.slane %v1134, 5
      %v1267 = vrot.slane %v1136, 5
      %1270 = vrot.lane.b32.xlu0 %v1266, 96
      %v1271 = vpop.permute.xlu0 %1270
      %1272 = vrot.lane.b32.xlu0 %v1267, 96
      %v1273 = vpop.permute.xlu0 %1272
      %vm1274 = vcmp.lt.s32.totalorder %v343, 96
      %v1275 = vsel %vm1274, %v1271, %v1273
      %v1276 = vsel %vm1274, %v1273, %v1271
      %s1277 = scalar_lea.vmem %s1, 5
      %v1278 = vld [vmem:[%s1277] ss:$8 sm:$0x3]
      %v1280 = vlaneseq
      %v1281 = vshrl.u32 %v1280, 7
      %v1282 = vsub.s32 0, %v1281
      %v1283 = vrot.slane %v1278, %v1282
      %v1284 = vlaneseq
      %v1285 = vshrl.u32 %v1284, 7
      %v1286 = vsub.s32 1, %v1285
      %v1287 = vrot.slane %v1278, %v1286
      %v1290 = vmul.f32 %v1275, %v1283
      %v1291 = vmul.f32 %v1276, %v1287
      %v1292 = vadd.f32 %v1236, %v1290
      %v1293 = vadd.f32 %v1237, %v1291
      %v1294 = vrot.slane %v1134, 6
      %v1295 = vrot.slane %v1136, 6
      %1298 = vrot.lane.b32.xlu0 %v1294, 80
      %v1299 = vpop.permute.xlu0 %1298
      %1300 = vrot.lane.b32.xlu0 %v1295, 80
      %v1301 = vpop.permute.xlu0 %1300
      %vm1302 = vcmp.lt.s32.totalorder %v343, 80
      %v1303 = vsel %vm1302, %v1299, %v1301
      %v1304 = vsel %vm1302, %v1301, %v1299
      %s1305 = scalar_lea.vmem %s1, 6
      %v1306 = vld [vmem:[%s1305] ss:$8 sm:$0x3]
      %v1308 = vlaneseq
      %v1309 = vshrl.u32 %v1308, 7
      %v1310 = vsub.s32 0, %v1309
      %v1311 = vrot.slane %v1306, %v1310
      %v1312 = vlaneseq
      %v1313 = vshrl.u32 %v1312, 7
      %v1314 = vsub.s32 1, %v1313
      %v1315 = vrot.slane %v1306, %v1314
      %v1318 = vmul.f32 %v1303, %v1311
      %v1319 = vmul.f32 %v1304, %v1315
      %v1320 = vadd.f32 %v1264, %v1318
      %v1321 = vadd.f32 %v1265, %v1319
      %v1322 = vadd.f32 %v1320, %v1292
      %v1323 = vadd.f32 %v1321, %v1293
      %v1324 = vxor.u32 %v1322, 2147483648
      %v1325 = vxor.u32 %v1323, 2147483648
      %v1326 = vmul.f32 %v1324, 1.442695
      %v1327 = vpow.pop %v1326
      %v1328 = vmul.f32 %v1325, 1.442695
      %v1329 = vpow.pop %v1328
      %v1330 = vadd.f32 %v1327, 1.0
      %v1331 = vadd.f32 %v1329, 1.0
      %v1332 = vrcp.pop %v1330
      %v1333 = vmul.f32 1.0, %v1332
      %v1334 = vrcp.pop %v1331
      %v1335 = vmul.f32 1.0, %v1334
      %v1336 = vsub.f32 1.0, %v1333
      %v1337 = vsub.f32 1.0, %v1335
      %v1338 = vtanh.pop %v272
      %v1339 = vlaneseq
      %v1340 = vshrl.u32 %v1339, 7
      %v1341 = vsub.s32 0, %v1340
      %v1342 = vrot.slane %v1336, %v1341
      %v1343 = vlaneseq
      %v1344 = vshrl.u32 %v1343, 7
      %v1345 = vsub.s32 0, %v1344
      %v1346 = vrot.slane %v1337, %v1345
      %v1348 = vcombine.high %v1338, %v1338
      %v1350 = vmul.f32 %v1342, %v1338
      %v1351 = vmul.f32 %v1346, %v1348
      %v1352 = vlaneseq
      %v1353 = vshrl.u32 %v1352, 7
      %v1354 = vsub.s32 0, %v1353
      %v1355 = vrot.slane %v1333, %v1354
      %v1356 = vlaneseq
      %v1357 = vshrl.u32 %v1356, 7
      %v1358 = vsub.s32 0, %v1357
      %v1359 = vrot.slane %v1335, %v1358
      %v1361 = vcombine.high %v273, %v273
      %v1363 = vmul.f32 %v1355, %v273
      %v1364 = vmul.f32 %v1359, %v1361
      %v1365 = vadd.f32 %v1350, %v1363
      %v1366 = vadd.f32 %v1351, %v1364
      %v1369 = vcombine.low %v1365, %v1366
      %1371 = vst [vmem:[%s271] sm:$0xff] %v1369
      %p1372 = scmp.lt.s32.totalorder %s17, 1
      %s1373 = scalar_select %p1372, %s17, 1
      %s1374 = smul.addr %s1373, 2
      %s1375 = smul.addr %s1374, 4
      %s1376 = scalar_lea.vmem %s6, %s1375
      // Predicated region
      $region45: #{spatial_attention_mtf.1} parent=43 // pred_check
        %p1377 = pneg %p171
      $region46: #{spatial_attention_mtf.1} parent=43 // pred_check_branch
        %1379 = sbr.rel (%p1377) target = $region48
      $region47: #{spatial_attention_mtf.1} parent=43 // pred_region
        _
      $region48: #{spatial_attention_mtf.1} parent=43 // pred_fallthru
        _
    $region44: #{spatial_attention_mtf.1} parent=5 // pred_fallthru
      _
    %p1380 = scmp.le.s32.totalorder 2, %s12
    // Predicated region
    $region49: #{spatial_attention_mtf.1} parent=5 // pred_check
      %p1381 = pneg %p1380
    $region50: #{spatial_attention_mtf.1} parent=5 // pred_check_branch
      %1383 = sbr.rel (%p1381) target = $region52
    $region51: #{spatial_attention_mtf.1} parent=5 // pred_region
      %s1384 = ssub.s32 %s12, 2
      // Predicated region
      $region53: #{spatial_attention_mtf.1} parent=51 // pred_check
        %p1385 = pneg %p177
      $region54: #{spatial_attention_mtf.1} parent=51 // pred_check_branch
        %1387 = sbr.rel (%p1385) target = $region56
      $region55: #{spatial_attention_mtf.1} parent=51 // pred_region
        %p1388 = scmp.lt.s32.totalorder %s18, 1
        %s1389 = scalar_select %p1388, %s18, 1
        %s1390 = smul.addr %s1389, 2
        %s1391 = smul.addr %s1390, 4
        %s1392 = scalar_lea.vmem %s6, %s1391
      $region56: #{spatial_attention_mtf.1} parent=51 // pred_fallthru
        _
    $region52: #{spatial_attention_mtf.1} parent=5 // pred_fallthru
      _
  $region6: #{spatial_attention_mtf.1} parent=0 // loop_footer
    %s16 = sadd.s32 1, %s12
  $region7: #{spatial_attention_mtf.1} parent=0 // loop_footer_branch
    %11 = sbr.rel target = $region3
  $region8: #{spatial_attention_mtf.1} parent=0 // loop_exit
    _

</llo_original>
